<compile_context>
chip_gen: v7x
topology: tpu7x:2x2x1
jax: 0.10.0
libtpu: 0.0.40
codegen_flags: <defaults>
</compile_context>

<pallas_src>
import functools

import jax
import jax.numpy as jnp
from jax.experimental import pallas as pl
from jax.experimental.pallas import tpu as pltpu


def _conv3x3_kernel(x_ref, w_ref, b_ref, o_ref, *, use_refl):
    # x_ref: (NB, C_in, H, W)      unpadded image block
    # w_ref: (C_out, 9*C_in)       weight, column index = (dy*3 + dx)*C_in + ci
    # b_ref: (C_out, 1)            bias
    # o_ref: (NB, C_out, H*W)      channel-major, lane-dense output block
    nb, c_in, h, w = x_ref.shape
    x = x_ref[...]

    # ---- reflect/zero pad built in VMEM (no extra HBM pass for padding) ----
    if use_refl:
        top = x[:, :, 1:2, :]
        bot = x[:, :, h - 2:h - 1, :]
    else:
        top = jnp.zeros((nb, c_in, 1, w), x.dtype)
        bot = top
    xr = jnp.concatenate([top, x, bot], axis=2)            # (NB, C_in, H+2, W)
    if use_refl:
        lef = xr[:, :, :, 1:2]
        rig = xr[:, :, :, w - 2:w - 1]
    else:
        lef = jnp.zeros((nb, c_in, h + 2, 1), x.dtype)
        rig = lef
    xp = jnp.concatenate([lef, xr, rig], axis=3)           # (NB, C_in, H+2, W+2)

    wmat = w_ref[...]                                       # (C_out, 9*C_in)
    bias = b_ref[...]                                       # (C_out, 1)

    # Static unroll over the (small) per-step batch.
    for b in range(nb):
        # Fold the 3x3 taps into the contraction dim: build the (9*C_in, H*W) tap
        # slab with one concat + one reshape (single relayout instead of nine).
        taps = [xp[b, :, dy:dy + h, dx:dx + w]
                for dy in range(3) for dx in range(3)]      # 9 x (C_in, H, W)
        slab = jnp.concatenate(taps, axis=0).reshape(9 * c_in, h * w)
        # One folded-K MXU matmul per image, f32 accumulate, bias fused in epilogue.
        res = jnp.dot(wmat, slab, preferred_element_type=jnp.float32)
        o_ref[b] = (res + bias).astype(o_ref.dtype)


def _pick_nb(n, c_in, c_out, h, w, itemsize=4):
    """Images per grid step: big enough to amortize grid/DMA overhead, small enough
    to stay far under the scoped VMEM default on all generations (v7x tightest),
    and >= 2 grid steps when possible so both v7x TensorCores are used."""
    hw = h * w
    # Rough per-image VMEM footprint inside one step: input block (double-buffered),
    # padded copy, 9-tap slab, f32 result, output block (double-buffered).
    per_img = (2 * c_in * hw + c_in * (h + 2) * (w + 2)
               + 9 * c_in * hw + c_out * hw + 2 * c_out * hw) * itemsize
    budget = 8 << 20
    nb = max(1, min(n, budget // max(per_img, 1)))
    if n >= 2:
        nb = min(nb, max(1, n // 2))   # keep the grid >= 2 steps (v7x megacore)
    while n % nb:                      # require an exact split (no tail masking)
        nb -= 1
    return nb


@functools.partial(jax.jit, static_argnames=("use_refl",))
def conv3x3_forward(x, weight, bias, use_refl=True):
    """Forward pass of Conv3x3.

    x:      (N, C_in, H, W)   float32, NCHW (PyTorch layout)
    weight: (C_out, C_in, 3, 3)
    bias:   (C_out,)
    returns (N, C_out, H, W)
    """
    N, C_in, H, W = x.shape
    C_out = weight.shape[0]
    HW = H * W

    # (C_out, C_in, 3, 3) -> (C_out, 9*C_in), column = (dy*3 + dx)*C_in + ci
    w_mat = jnp.transpose(weight, (0, 2, 3, 1)).reshape(C_out, 9 * C_in)
    b2 = bias.reshape(C_out, 1)

    NB = _pick_nb(N, C_in, C_out, H, W, itemsize=x.dtype.itemsize)
    kernel = functools.partial(_conv3x3_kernel, use_refl=use_refl)

    out_flat = pl.pallas_call(
        kernel,
        out_shape=jax.ShapeDtypeStruct((N, C_out, HW), x.dtype),
        grid_spec=pltpu.PrefetchScalarGridSpec(
            num_scalar_prefetch=0,
            grid=(N // NB,),
            in_specs=[
                # NB unpadded images per step (contiguous NCHW slab in HBM)
                pl.BlockSpec((NB, C_in, H, W), lambda n: (n, 0, 0, 0)),
                # full weight / bias resident every step
                pl.BlockSpec((C_out, 9 * C_in), lambda n: (0, 0)),
                pl.BlockSpec((C_out, 1), lambda n: (0, 0)),
            ],
            out_specs=pl.BlockSpec((NB, C_out, HW), lambda n: (n, 0, 0)),
        ),
        compiler_params=pltpu.CompilerParams(
            dimension_semantics=("parallel",)),
    )(x, w_mat, b2)

    # (N, C_out, H*W) -> (N, C_out, H, W): contiguous, free reshape (no transpose).
    return out_flat.reshape(N, C_out, H, W)


if __name__ == "__main__":
    key = jax.random.PRNGKey(0)
    k_x, k_w, k_b = jax.random.split(key, 3)

    N, C_in, H, W = 2, 4, 16, 16
    C_out = 8

    x = jax.random.normal(k_x, (N, C_in, H, W), dtype=jnp.float32)
    # deterministic "kaiming-uniform-like" init (synthetic, not a checkpoint)
    fan_in = C_in * 3 * 3
    bound = 1.0 / (fan_in ** 0.5)
    weight = jax.random.uniform(k_w, (C_out, C_in, 3, 3),
                                minval=-bound, maxval=bound, dtype=jnp.float32)
    bias = jax.random.uniform(k_b, (C_out,), minval=-bound, maxval=bound,
                              dtype=jnp.float32)

    for use_refl in (True, False):
        out = conv3x3_forward(x, weight, bias, use_refl=use_refl)
        out = jax.block_until_ready(out)

        pad_mode = "reflect" if use_refl else "constant"
        x_pad = jnp.pad(x, ((0, 0), (0, 0), (1, 1), (1, 1)), mode=pad_mode)
        ref = jax.lax.conv_general_dilated(
            x_pad, weight, window_strides=(1, 1), padding="VALID",
            dimension_numbers=("NCHW", "OIHW", "NCHW")) + bias.reshape(1, C_out, 1, 1)
        assert out.shape == (N, C_out, H, W)
        assert jnp.allclose(out, ref, atol=5e-4, rtol=5e-4), f"mismatch (use_refl={use_refl})"

    print("KERNEL_OK")
</pallas_src>

<mosaic_0001>
module attributes {stable_mosaic.version = 11 : i64} {
  func.func @_conv3x3_kernel(%arg0: i32, %arg1: memref<1x4x16x16xf32, #tpu.memory_space<vmem>>, %arg2: memref<8x36xf32, #tpu.memory_space<vmem>>, %arg3: memref<8x1xf32, #tpu.memory_space<vmem>>, %arg4: memref<1x8x256xf32, #tpu.memory_space<vmem>>) attributes {dimension_semantics = [#tpu.dimension_semantics<parallel>], iteration_bounds = array<i64: 2>, scalar_prefetch = 0 : i64, scratch_operands = 0 : i64, tpu.core_type = #tpu.core_type<tc>, window_params = [{transform_indices = @transform_0, window_bounds = array<i64: 1, 4, 16, 16>}, {pipeline_mode = #tpu.pipeline_mode<synchronous>, transform_indices = @transform_1, window_bounds = array<i64: 8, 36>}, {pipeline_mode = #tpu.pipeline_mode<synchronous>, transform_indices = @transform_2, window_bounds = array<i64: 8, 1>}, {transform_indices = @transform_3, window_bounds = array<i64: 1, 8, 256>}]} {
    %c0 = arith.constant 0 : index
    %c0_0 = arith.constant 0 : index
    %c0_1 = arith.constant 0 : index
    %c0_2 = arith.constant 0 : index
    %0 = vector.load %arg1[%c0, %c0_0, %c0_1, %c0_2] : memref<1x4x16x16xf32, #tpu.memory_space<vmem>>, vector<1x4x16x16xf32>
    %1 = vector.extract_strided_slice %0 {offsets = [0, 0, 1, 0], sizes = [1, 4, 1, 16], strides = [1, 1, 1, 1]} : vector<1x4x16x16xf32> to vector<1x4x1x16xf32>
    %2 = vector.extract_strided_slice %0 {offsets = [0, 0, 14, 0], sizes = [1, 4, 1, 16], strides = [1, 1, 1, 1]} : vector<1x4x16x16xf32> to vector<1x4x1x16xf32>
    %3 = tpu.concatenate %1, %0, %2 in 2 : vector<1x4x1x16xf32>, vector<1x4x16x16xf32>, vector<1x4x1x16xf32> -> vector<1x4x18x16xf32>
    %4 = vector.extract_strided_slice %3 {offsets = [0, 0, 0, 1], sizes = [1, 4, 18, 1], strides = [1, 1, 1, 1]} : vector<1x4x18x16xf32> to vector<1x4x18x1xf32>
    %5 = vector.extract_strided_slice %3 {offsets = [0, 0, 0, 14], sizes = [1, 4, 18, 1], strides = [1, 1, 1, 1]} : vector<1x4x18x16xf32> to vector<1x4x18x1xf32>
    %6 = tpu.concatenate %4, %3, %5 in 3 : vector<1x4x18x1xf32>, vector<1x4x18x16xf32>, vector<1x4x18x1xf32> -> vector<1x4x18x18xf32>
    %c0_3 = arith.constant 0 : index
    %c0_4 = arith.constant 0 : index
    %7 = vector.load %arg2[%c0_3, %c0_4] : memref<8x36xf32, #tpu.memory_space<vmem>>, vector<8x36xf32>
    %c0_5 = arith.constant 0 : index
    %c0_6 = arith.constant 0 : index
    %8 = vector.load %arg3[%c0_5, %c0_6] : memref<8x1xf32, #tpu.memory_space<vmem>>, vector<8x1xf32>
    %9 = vector.extract_strided_slice %6 {offsets = [0, 0, 0, 0], sizes = [1, 4, 16, 16], strides = [1, 1, 1, 1]} : vector<1x4x18x18xf32> to vector<1x4x16x16xf32>
    %10 = vector.shape_cast %9 : vector<1x4x16x16xf32> to vector<4x16x16xf32>
    %11 = vector.extract_strided_slice %6 {offsets = [0, 0, 0, 1], sizes = [1, 4, 16, 16], strides = [1, 1, 1, 1]} : vector<1x4x18x18xf32> to vector<1x4x16x16xf32>
    %12 = vector.shape_cast %11 : vector<1x4x16x16xf32> to vector<4x16x16xf32>
    %13 = vector.extract_strided_slice %6 {offsets = [0, 0, 0, 2], sizes = [1, 4, 16, 16], strides = [1, 1, 1, 1]} : vector<1x4x18x18xf32> to vector<1x4x16x16xf32>
    %14 = vector.shape_cast %13 : vector<1x4x16x16xf32> to vector<4x16x16xf32>
    %15 = vector.extract_strided_slice %6 {offsets = [0, 0, 1, 0], sizes = [1, 4, 16, 16], strides = [1, 1, 1, 1]} : vector<1x4x18x18xf32> to vector<1x4x16x16xf32>
    %16 = vector.shape_cast %15 : vector<1x4x16x16xf32> to vector<4x16x16xf32>
    %17 = vector.extract_strided_slice %6 {offsets = [0, 0, 1, 1], sizes = [1, 4, 16, 16], strides = [1, 1, 1, 1]} : vector<1x4x18x18xf32> to vector<1x4x16x16xf32>
    %18 = vector.shape_cast %17 : vector<1x4x16x16xf32> to vector<4x16x16xf32>
    %19 = vector.extract_strided_slice %6 {offsets = [0, 0, 1, 2], sizes = [1, 4, 16, 16], strides = [1, 1, 1, 1]} : vector<1x4x18x18xf32> to vector<1x4x16x16xf32>
    %20 = vector.shape_cast %19 : vector<1x4x16x16xf32> to vector<4x16x16xf32>
    %21 = vector.extract_strided_slice %6 {offsets = [0, 0, 2, 0], sizes = [1, 4, 16, 16], strides = [1, 1, 1, 1]} : vector<1x4x18x18xf32> to vector<1x4x16x16xf32>
    %22 = vector.shape_cast %21 : vector<1x4x16x16xf32> to vector<4x16x16xf32>
    %23 = vector.extract_strided_slice %6 {offsets = [0, 0, 2, 1], sizes = [1, 4, 16, 16], strides = [1, 1, 1, 1]} : vector<1x4x18x18xf32> to vector<1x4x16x16xf32>
    %24 = vector.shape_cast %23 : vector<1x4x16x16xf32> to vector<4x16x16xf32>
    %25 = vector.extract_strided_slice %6 {offsets = [0, 0, 2, 2], sizes = [1, 4, 16, 16], strides = [1, 1, 1, 1]} : vector<1x4x18x18xf32> to vector<1x4x16x16xf32>
    %26 = vector.shape_cast %25 : vector<1x4x16x16xf32> to vector<4x16x16xf32>
    %27 = tpu.concatenate %10, %12, %14, %16, %18, %20, %22, %24, %26 in 0 : vector<4x16x16xf32>, vector<4x16x16xf32>, vector<4x16x16xf32>, vector<4x16x16xf32>, vector<4x16x16xf32>, vector<4x16x16xf32>, vector<4x16x16xf32>, vector<4x16x16xf32>, vector<4x16x16xf32> -> vector<36x16x16xf32>
    %28 = vector.shape_cast %27 : vector<36x16x16xf32> to vector<36x256xf32>
    %cst = arith.constant dense<0.000000e+00> : vector<8x256xf32>
    %29 = tpu.matmul %7, %28, %cst {dimension_numbers = #tpu.dot_dimension_numbers<[1], [0], [0], [1], [0, 0, 1, 1], [], []>} : vector<8x36xf32>, vector<36x256xf32>, vector<8x256xf32> -> vector<8x256xf32>
    %30 = vector.broadcast %8 : vector<8x1xf32> to vector<8x256xf32>
    %31 = arith.addf %29, %30 : vector<8x256xf32>
    %c0_7 = arith.constant 0 : index
    %c0_8 = arith.constant 0 : index
    %c0_9 = arith.constant 0 : index
    %32 = vector.load %arg4[%c0_7, %c0_8, %c0_9] : memref<1x8x256xf32, #tpu.memory_space<vmem>>, vector<1x8x256xf32>
    %33 = vector.shape_cast %32 : vector<1x8x256xf32> to vector<8x256xf32>
    %34 = vector.shape_cast %31 : vector<8x256xf32> to vector<1x8x256xf32>
    tpu.vector_store %arg4[%c0_7, %c0_8, %c0_9], %34 {strides = array<i32>} : memref<1x8x256xf32, #tpu.memory_space<vmem>>, vector<1x8x256xf32>,
    return
  }
  func.func @transform_0(%arg0: i32) -> (i32, i32, i32, i32) {
    %c0_i32 = arith.constant 0 : i32
    %c0_i32_0 = arith.constant 0 : i32
    %c0_i32_1 = arith.constant 0 : i32
    %c0_i32_2 = arith.constant 0 : i32
    return %arg0, %c0_i32, %c0_i32_0, %c0_i32_1 : i32, i32, i32, i32
  }
  func.func @transform_1(%arg0: i32) -> (i32, i32) {
    %c0_i32 = arith.constant 0 : i32
    %c0_i32_0 = arith.constant 0 : i32
    %c0_i32_1 = arith.constant 0 : i32
    return %c0_i32, %c0_i32_0 : i32, i32
  }
  func.func @transform_2(%arg0: i32) -> (i32, i32) {
    %c0_i32 = arith.constant 0 : i32
    %c0_i32_0 = arith.constant 0 : i32
    %c0_i32_1 = arith.constant 0 : i32
    return %c0_i32, %c0_i32_0 : i32, i32
  }
  func.func @transform_3(%arg0: i32) -> (i32, i32, i32) {
    %c0_i32 = arith.constant 0 : i32
    %c0_i32_0 = arith.constant 0 : i32
    %c0_i32_1 = arith.constant 0 : i32
    return %arg0, %c0_i32, %c0_i32_0 : i32, i32, i32
  }
}

</mosaic_0001>

<llo_original>
// kernel: conv3x3_forward.1
$region0: #{conv3x3_forward.1}
  #allocation0 [shape = 'u32[]', space=smem, size = 0x4, offset = 0x4, fixed_abs, tag = 'smem constant byte address 0x4 - core index']
  #allocation1 [shape = 'u32[144,128]{1,0:T(1,128)}', space=vmem, size = 0x12000, scoped, tag = 'internal scratch']
  %s0 = inlined_call_operand.vmem [shape: f32[2,4,16,16], index: 0, kind: input, shape index: {}]
  %s1 = inlined_call_operand.vmem [shape: f32[8,36], index: 1, kind: input, shape index: {}]
  %s2 = inlined_call_operand.vmem [shape: f32[8,1], index: 2, kind: input, shape index: {}]
  %s3 = inlined_call_operand.vmem [shape: f32[2,8,256], index: 3, kind: output, shape index: {}]
  %s4 = sld [smem:[#allocation0]]
  $region45: #{conv3x3_forward.1} parent=0
    _
  %s6 = ssub.s32 1, %s4
  %s7 = scalar_select 0, %s6, %s4
  loop: start=0, step=1, limit=4
  $region2: #{conv3x3_forward.1} parent=0 // loop_pre_header
    _
  $region3: #{conv3x3_forward.1} parent=0 // loop_header
    %s9 = sphi 0, %s13
    %p10 = scmp.ge.s32.totalorder %s9, 4
    %s19 = sphi 0, %s21
    %s22 = sphi 0, %s19
    %s23 = sphi 0, %s22
    %s39 = sphi 0, %s23
    %s43 = sphi 0, %s43
    %s45 = sphi 0, %s43
    %s46 = sphi 0, %s45
    %s60 = sphi 0, %s46
    %s64 = sphi 0, %s64
    %s66 = sphi 0, %s64
    %s67 = sphi 0, %s66
    %s81 = sphi 0, %s67
    %s87 = sphi 0, %s89
    %s90 = sphi 0, %s87
    %s91 = sphi 0, %s90
    %s107 = sphi 0, %s91
  $region4: #{conv3x3_forward.1} parent=0 // loop_header_branch
    %12 = sbr.rel (%p10) target = $region8
  $region5: #{conv3x3_forward.1} parent=0 // loop_body
    %s14 = ssub.s32 %s9, 1
    %s15 = ssub.s32 %s9, 2
    %s16 = sadd.s32 %s9, 1
    %s17 = ssub.s32 %s9, %s16
    %p18 = scmp.eq.s32.totalorder %s17, 0
    %s20 = sadd.s32 %s19, 1
    %s21 = scalar_select %p18, %s19, %s20
    %p24 = pneg %p18
    %p25 = scmp.eq.s32.totalorder %s9, 1
    %p26 = por %p24, %p25
    %p27 = scmp.ne.s32.totalorder %s19, %s22
    %p28 = scmp.eq.s32.totalorder %s9, 0
    %p29 = por %p27, %p28
    %p30 = scmp.ne.s32.totalorder %s19, %s22
    %p31 = scmp.eq.s32.totalorder %s14, 1
    %p32 = por %p30, %p31
    %p33 = scmp.ne.s32.totalorder %s22, %s23
    %p34 = scmp.eq.s32.totalorder %s14, 0
    %p35 = por %p33, %p34
    %p36 = scmp.ne.s32.totalorder %s22, %s23
    %p37 = scmp.eq.s32.totalorder %s15, 1
    %p38 = por %p36, %p37
    %p40 = scmp.ne.s32.totalorder %s23, %s39
    %p41 = scmp.eq.s32.totalorder %s15, 0
    %p42 = por %p40, %p41
    %s44 = sadd.s32 %s43, 1
    %p47 = scmp.eq.s32.totalorder %s9, 1
    %p48 = scmp.ne.s32.totalorder %s43, %s45
    %p49 = scmp.eq.s32.totalorder %s9, 0
    %p50 = por %p48, %p49
    %p51 = scmp.ne.s32.totalorder %s43, %s45
    %p52 = scmp.eq.s32.totalorder %s14, 1
    %p53 = por %p51, %p52
    %p54 = scmp.ne.s32.totalorder %s45, %s46
    %p55 = scmp.eq.s32.totalorder %s14, 0
    %p56 = por %p54, %p55
    %p57 = scmp.ne.s32.totalorder %s45, %s46
    %p58 = scmp.eq.s32.totalorder %s15, 1
    %p59 = por %p57, %p58
    %p61 = scmp.ne.s32.totalorder %s46, %s60
    %p62 = scmp.eq.s32.totalorder %s15, 0
    %p63 = por %p61, %p62
    %s65 = sadd.s32 %s64, 1
    %p68 = scmp.eq.s32.totalorder %s9, 1
    %p69 = scmp.ne.s32.totalorder %s64, %s66
    %p70 = scmp.eq.s32.totalorder %s9, 0
    %p71 = por %p69, %p70
    %p72 = scmp.ne.s32.totalorder %s64, %s66
    %p73 = scmp.eq.s32.totalorder %s14, 1
    %p74 = por %p72, %p73
    %p75 = scmp.ne.s32.totalorder %s66, %s67
    %p76 = scmp.eq.s32.totalorder %s14, 0
    %p77 = por %p75, %p76
    %p78 = scmp.ne.s32.totalorder %s66, %s67
    %p79 = scmp.eq.s32.totalorder %s15, 1
    %p80 = por %p78, %p79
    %p82 = scmp.ne.s32.totalorder %s67, %s81
    %p83 = scmp.eq.s32.totalorder %s15, 0
    %p84 = por %p82, %p83
    %s85 = ssub.s32 %s9, %s16
    %p86 = scmp.eq.s32.totalorder %s85, 0
    %s88 = sadd.s32 %s87, 1
    %s89 = scalar_select %p86, %s87, %s88
    %p92 = pneg %p86
    %p93 = scmp.eq.s32.totalorder %s9, 1
    %p94 = por %p92, %p93
    %p95 = scmp.ne.s32.totalorder %s87, %s90
    %p96 = scmp.eq.s32.totalorder %s9, 0
    %p97 = por %p95, %p96
    %p98 = scmp.ne.s32.totalorder %s87, %s90
    %p99 = scmp.eq.s32.totalorder %s14, 1
    %p100 = por %p98, %p99
    %p101 = scmp.ne.s32.totalorder %s90, %s91
    %p102 = scmp.eq.s32.totalorder %s14, 0
    %p103 = por %p101, %p102
    %p104 = scmp.ne.s32.totalorder %s90, %s91
    %p105 = scmp.eq.s32.totalorder %s15, 1
    %p106 = por %p104, %p105
    %p108 = scmp.ne.s32.totalorder %s91, %s107
    %p109 = scmp.eq.s32.totalorder %s15, 0
    %p110 = por %p108, %p109
    %p111 = scmp.le.s32.totalorder 1, %s9
    %p112 = scmp.lt.s32.totalorder %s9, 3
    %p113 = pnand %p111, %p112
    %p114 = pneg %p113
    // Predicated region
    $region9: #{conv3x3_forward.1} parent=5 // pred_check
      _
    $region10: #{conv3x3_forward.1} parent=5 // pred_check_branch
      %116 = sbr.rel (%p113) target = $region12
    $region11: #{conv3x3_forward.1} parent=5 // pred_region
      %s117 = ssub.s32 %s9, 1
      // Predicated region
      $region13: #{conv3x3_forward.1} parent=11 // pred_check
        %p118 = pneg %p56
      $region14: #{conv3x3_forward.1} parent=11 // pred_check_branch
        %120 = sbr.rel (%p118) target = $region16
      $region15: #{conv3x3_forward.1} parent=11 // pred_region
        _
      $region16: #{conv3x3_forward.1} parent=11 // pred_fallthru
        _
      // Predicated region
      $region17: #{conv3x3_forward.1} parent=11 // pred_check
        %p121 = pneg %p77
      $region18: #{conv3x3_forward.1} parent=11 // pred_check_branch
        %123 = sbr.rel (%p121) target = $region20
      $region19: #{conv3x3_forward.1} parent=11 // pred_region
        _
      $region20: #{conv3x3_forward.1} parent=11 // pred_fallthru
        _
    $region12: #{conv3x3_forward.1} parent=5 // pred_fallthru
      _
    %p124 = scmp.lt.s32.totalorder %s9, 2
    // Predicated region
    $region21: #{conv3x3_forward.1} parent=5 // pred_check
      %p125 = pneg %p124
    $region22: #{conv3x3_forward.1} parent=5 // pred_check_branch
      %127 = sbr.rel (%p125) target = $region24
    $region23: #{conv3x3_forward.1} parent=5 // pred_region
      // Predicated region
      $region25: #{conv3x3_forward.1} parent=23 // pred_check
        %p128 = pneg %p29
      $region26: #{conv3x3_forward.1} parent=23 // pred_check_branch
        %130 = sbr.rel (%p128) target = $region28
      $region27: #{conv3x3_forward.1} parent=23 // pred_region
        %p131 = scmp.lt.s32.totalorder %s9, 1
        %s132 = scalar_select %p131, %s9, 1
        %s133 = smul.addr %s132, 8
        %s134 = smul.addr %s133, 8
        %s135 = scalar_lea.vmem %s0, %s134
      $region28: #{conv3x3_forward.1} parent=23 // pred_fallthru
        _
    $region24: #{conv3x3_forward.1} parent=5 // pred_fallthru
      _
    %p136 = scmp.le.s32.totalorder 1, %s9
    %p137 = scmp.lt.s32.totalorder %s9, 3
    %p138 = pnand %p136, %p137
    %p139 = pneg %p138
    // Predicated region
    $region29: #{conv3x3_forward.1} parent=5 // pred_check
      _
    $region30: #{conv3x3_forward.1} parent=5 // pred_check_branch
      %141 = sbr.rel (%p138) target = $region32
    $region31: #{conv3x3_forward.1} parent=5 // pred_region
      %s142 = ssub.s32 %s9, 1
      %p143 = scmp.lt.s32.totalorder %s14, 1
      %s144 = scalar_select %p143, %s14, 1
      %s145 = smul.addr %s144, 8
      %s146 = smul.addr %s145, 8
      %s147 = scalar_lea.vmem %s0, %s146
      %p148 = pneg %p35
      %p149 = pneg %p32
      %p150 = pneg %p56
      %p151 = pneg %p53
      %p152 = pneg %p77
      %p153 = pneg %p74
      %p154 = pneg %p103
      %p155 = pneg %p100
      %p156 = scmp.lt.s32.totalorder %s14, 1
      %s157 = scalar_select %p156, %s14, 1
      %s158 = smul.addr %s157, 2
      %s159 = smul.addr %s158, 8
      %s160 = scalar_lea.vmem %s3, %s159
      %p161 = scmp.lt.s32.totalorder %s14, 1
      %s162 = scalar_select %p161, %s14, 1
      %s163 = smul.addr %s162, 8
      %s164 = smul.addr %s163, 8
      %s165 = scalar_lea.vmem %s0, %s164
      %p166 = scmp.lt.s32.totalorder %s14, 1
      %s167 = scalar_select %p166, %s14, 1
      %s168 = smul.addr %s167, 2
      %s169 = smul.addr %s168, 8
      %s170 = scalar_lea.vmem %s3, %s169
      %v171 = vld [vmem:[%s165] sm:$0xff]
      %v172 = vld [vmem:[%s165 + $0x8] sm:$0xff]
      %v173 = vld [vmem:[%s165 + $0x10] sm:$0xff]
      %v174 = vld [vmem:[%s165 + $0x18] sm:$0xff]
      %v175 = vld [vmem:[%s165 + $0x20] sm:$0xff]
      %v176 = vld [vmem:[%s165 + $0x28] sm:$0xff]
      %v177 = vld [vmem:[%s165 + $0x30] sm:$0xff]
      %v178 = vld [vmem:[%s165 + $0x38] sm:$0xff]
      %v183 = vrot.slane %v171, 1
      %v184 = vrot.slane %v173, 1
      %v185 = vrot.slane %v175, 1
      %v186 = vrot.slane %v177, 1
      %vm195 = vcmask 1040384
      %v196 = vrot.slane %v171, 7
      %v197 = vrot.slane %v172, 7
      %v198 = vsel %vm195, %v196, %v197
      %v199 = vrot.slane %v173, 7
      %v200 = vrot.slane %v174, 7
      %v201 = vsel %vm195, %v199, %v200
      %v202 = vrot.slane %v175, 7
      %v203 = vrot.slane %v176, 7
      %v204 = vsel %vm195, %v202, %v203
      %v205 = vrot.slane %v177, 7
      %v206 = vrot.slane %v178, 7
      %v207 = vsel %vm195, %v205, %v206
      %v216 = vrot.slane %v172, 5
      %v217 = vrot.slane %v174, 5
      %v218 = vrot.slane %v176, 5
      %v219 = vrot.slane %v178, 5
      %v224 = vsel %vm195, %v183, %v196
      %v225 = vsel %vm195, %v184, %v199
      %v226 = vsel %vm195, %v185, %v202
      %v227 = vsel %vm195, %v186, %v205
      %v228 = vsel %vm195, %v197, %v216
      %v229 = vsel %vm195, %v200, %v217
      %v230 = vsel %vm195, %v203, %v218
      %v231 = vsel %vm195, %v206, %v219
      %240 = vrot.lane.b32.xlu0 %v224, 127
      %v241 = vpop.permute.xlu0 %240
      %242 = vrot.lane.b32.xlu0 %v198, 127
      %v243 = vpop.permute.xlu0 %242
      %244 = vrot.lane.b32.xlu0 %v228, 127
      %v245 = vpop.permute.xlu0 %244
      %246 = vrot.lane.b32.xlu0 %v225, 127
      %v247 = vpop.permute.xlu0 %246
      %248 = vrot.lane.b32.xlu0 %v201, 127
      %v249 = vpop.permute.xlu0 %248
      %250 = vrot.lane.b32.xlu0 %v229, 127
      %v251 = vpop.permute.xlu0 %250
      %252 = vrot.lane.b32.xlu0 %v226, 127
      %v253 = vpop.permute.xlu0 %252
      %254 = vrot.lane.b32.xlu0 %v204, 127
      %v255 = vpop.permute.xlu0 %254
      %256 = vrot.lane.b32.xlu0 %v230, 127
      %v257 = vpop.permute.xlu0 %256
      %258 = vrot.lane.b32.xlu0 %v227, 127
      %v259 = vpop.permute.xlu0 %258
      %260 = vrot.lane.b32.xlu0 %v207, 127
      %v261 = vpop.permute.xlu0 %260
      %262 = vrot.lane.b32.xlu0 %v231, 127
      %v263 = vpop.permute.xlu0 %262
      %276 = vrot.lane.b32.xlu0 %v224, 1
      %v277 = vpop.permute.xlu0 %276
      %278 = vrot.lane.b32.xlu0 %v198, 1
      %v279 = vpop.permute.xlu0 %278
      %280 = vrot.lane.b32.xlu0 %v228, 1
      %v281 = vpop.permute.xlu0 %280
      %282 = vrot.lane.b32.xlu0 %v225, 1
      %v283 = vpop.permute.xlu0 %282
      %284 = vrot.lane.b32.xlu0 %v201, 1
      %v285 = vpop.permute.xlu0 %284
      %286 = vrot.lane.b32.xlu0 %v229, 1
      %v287 = vpop.permute.xlu0 %286
      %288 = vrot.lane.b32.xlu0 %v226, 1
      %v289 = vpop.permute.xlu0 %288
      %290 = vrot.lane.b32.xlu0 %v204, 1
      %v291 = vpop.permute.xlu0 %290
      %292 = vrot.lane.b32.xlu0 %v230, 1
      %v293 = vpop.permute.xlu0 %292
      %294 = vrot.lane.b32.xlu0 %v227, 1
      %v295 = vpop.permute.xlu0 %294
      %296 = vrot.lane.b32.xlu0 %v207, 1
      %v297 = vpop.permute.xlu0 %296
      %298 = vrot.lane.b32.xlu0 %v231, 1
      %v299 = vpop.permute.xlu0 %298
      %312 = vrot.lane.b32.xlu0 %v224, 3
      %v313 = vpop.permute.xlu0 %312
      %314 = vrot.lane.b32.xlu0 %v198, 3
      %v315 = vpop.permute.xlu0 %314
      %316 = vrot.lane.b32.xlu0 %v228, 3
      %v317 = vpop.permute.xlu0 %316
      %318 = vrot.lane.b32.xlu0 %v225, 3
      %v319 = vpop.permute.xlu0 %318
      %320 = vrot.lane.b32.xlu0 %v201, 3
      %v321 = vpop.permute.xlu0 %320
      %322 = vrot.lane.b32.xlu0 %v229, 3
      %v323 = vpop.permute.xlu0 %322
      %324 = vrot.lane.b32.xlu0 %v226, 3
      %v325 = vpop.permute.xlu0 %324
      %326 = vrot.lane.b32.xlu0 %v204, 3
      %v327 = vpop.permute.xlu0 %326
      %328 = vrot.lane.b32.xlu0 %v230, 3
      %v329 = vpop.permute.xlu0 %328
      %330 = vrot.lane.b32.xlu0 %v227, 3
      %v331 = vpop.permute.xlu0 %330
      %332 = vrot.lane.b32.xlu0 %v207, 3
      %v333 = vpop.permute.xlu0 %332
      %334 = vrot.lane.b32.xlu0 %v231, 3
      %v335 = vpop.permute.xlu0 %334
      %vm348 = vcmask 7168
      %v349 = vsel %vm348, %v241, %v277
      %v350 = vsel %vm348, %v243, %v279
      %v351 = vsel %vm348, %v245, %v281
      %v352 = vsel %vm348, %v247, %v283
      %v353 = vsel %vm348, %v249, %v285
      %v354 = vsel %vm348, %v251, %v287
      %v355 = vsel %vm348, %v253, %v289
      %v356 = vsel %vm348, %v255, %v291
      %v357 = vsel %vm348, %v257, %v293
      %v358 = vsel %vm348, %v259, %v295
      %v359 = vsel %vm348, %v261, %v297
      %v360 = vsel %vm348, %v263, %v299
      %vm361 = vcmask 138240
      %v362 = vsel %vm361, %v349, %v313
      %v363 = vsel %vm361, %v350, %v315
      %v364 = vsel %vm361, %v351, %v317
      %v365 = vsel %vm361, %v352, %v319
      %v366 = vsel %vm361, %v353, %v321
      %v367 = vsel %vm361, %v354, %v323
      %v368 = vsel %vm361, %v355, %v325
      %v369 = vsel %vm361, %v356, %v327
      %v370 = vsel %vm361, %v357, %v329
      %v371 = vsel %vm361, %v358, %v331
      %v372 = vsel %vm361, %v359, %v333
      %v373 = vsel %vm361, %v360, %v335
      %v374 = vld [vmem:[%s1] sm:$0xff]
      %v375 = vld [vmem:[%s2] sm:$0xff]
      %384 = vrot.lane.b32.xlu0 %v362, 127
      %v385 = vpop.permute.xlu0 %384
      %386 = vrot.lane.b32.xlu0 %v363, 127
      %v387 = vpop.permute.xlu0 %386
      %388 = vrot.lane.b32.xlu0 %v365, 127
      %v389 = vpop.permute.xlu0 %388
      %390 = vrot.lane.b32.xlu0 %v366, 127
      %v391 = vpop.permute.xlu0 %390
      %392 = vrot.lane.b32.xlu0 %v368, 127
      %v393 = vpop.permute.xlu0 %392
      %394 = vrot.lane.b32.xlu0 %v369, 127
      %v395 = vpop.permute.xlu0 %394
      %396 = vrot.lane.b32.xlu0 %v371, 127
      %v397 = vpop.permute.xlu0 %396
      %398 = vrot.lane.b32.xlu0 %v372, 127
      %v399 = vpop.permute.xlu0 %398
      %408 = vrot.lane.b32.xlu0 %v362, 126
      %v409 = vpop.permute.xlu0 %408
      %410 = vrot.lane.b32.xlu0 %v363, 126
      %v411 = vpop.permute.xlu0 %410
      %412 = vrot.lane.b32.xlu0 %v365, 126
      %v413 = vpop.permute.xlu0 %412
      %414 = vrot.lane.b32.xlu0 %v366, 126
      %v415 = vpop.permute.xlu0 %414
      %416 = vrot.lane.b32.xlu0 %v368, 126
      %v417 = vpop.permute.xlu0 %416
      %418 = vrot.lane.b32.xlu0 %v369, 126
      %v419 = vpop.permute.xlu0 %418
      %420 = vrot.lane.b32.xlu0 %v371, 126
      %v421 = vpop.permute.xlu0 %420
      %422 = vrot.lane.b32.xlu0 %v372, 126
      %v423 = vpop.permute.xlu0 %422
      %vm436 = vcmask 1046528
      %v437 = vrot.slane %v362, 1
      %v438 = vrot.slane %v363, 1
      %v439 = vsel %vm436, %v437, %v438
      %v440 = vrot.slane %v364, 1
      %v441 = vsel %vm436, %v438, %v440
      %v442 = vrot.slane %v365, 1
      %v443 = vrot.slane %v366, 1
      %v444 = vsel %vm436, %v442, %v443
      %v445 = vrot.slane %v367, 1
      %v446 = vsel %vm436, %v443, %v445
      %v447 = vrot.slane %v368, 1
      %v448 = vrot.slane %v369, 1
      %v449 = vsel %vm436, %v447, %v448
      %v450 = vrot.slane %v370, 1
      %v451 = vsel %vm436, %v448, %v450
      %v452 = vrot.slane %v371, 1
      %v453 = vrot.slane %v372, 1
      %v454 = vsel %vm436, %v452, %v453
      %v455 = vrot.slane %v373, 1
      %v456 = vsel %vm436, %v453, %v455
      %465 = vrot.lane.b32.xlu0 %v439, 127
      %v466 = vpop.permute.xlu0 %465
      %467 = vrot.lane.b32.xlu0 %v441, 127
      %v468 = vpop.permute.xlu0 %467
      %469 = vrot.lane.b32.xlu0 %v444, 127
      %v470 = vpop.permute.xlu0 %469
      %471 = vrot.lane.b32.xlu0 %v446, 127
      %v472 = vpop.permute.xlu0 %471
      %473 = vrot.lane.b32.xlu0 %v449, 127
      %v474 = vpop.permute.xlu0 %473
      %475 = vrot.lane.b32.xlu0 %v451, 127
      %v476 = vpop.permute.xlu0 %475
      %477 = vrot.lane.b32.xlu0 %v454, 127
      %v478 = vpop.permute.xlu0 %477
      %479 = vrot.lane.b32.xlu0 %v456, 127
      %v480 = vpop.permute.xlu0 %479
      %489 = vrot.lane.b32.xlu0 %v439, 126
      %v490 = vpop.permute.xlu0 %489
      %491 = vrot.lane.b32.xlu0 %v441, 126
      %v492 = vpop.permute.xlu0 %491
      %493 = vrot.lane.b32.xlu0 %v444, 126
      %v494 = vpop.permute.xlu0 %493
      %495 = vrot.lane.b32.xlu0 %v446, 126
      %v496 = vpop.permute.xlu0 %495
      %497 = vrot.lane.b32.xlu0 %v449, 126
      %v498 = vpop.permute.xlu0 %497
      %499 = vrot.lane.b32.xlu0 %v451, 126
      %v500 = vpop.permute.xlu0 %499
      %501 = vrot.lane.b32.xlu0 %v454, 126
      %v502 = vpop.permute.xlu0 %501
      %503 = vrot.lane.b32.xlu0 %v456, 126
      %v504 = vpop.permute.xlu0 %503
      %vm513 = vcmask 1045504
      %v514 = vrot.slane %v362, 2
      %v515 = vrot.slane %v363, 2
      %v516 = vsel %vm513, %v514, %v515
      %v517 = vrot.slane %v364, 2
      %v518 = vsel %vm513, %v515, %v517
      %v519 = vrot.slane %v365, 2
      %v520 = vrot.slane %v366, 2
      %v521 = vsel %vm513, %v519, %v520
      %v522 = vrot.slane %v367, 2
      %v523 = vsel %vm513, %v520, %v522
      %v524 = vrot.slane %v368, 2
      %v525 = vrot.slane %v369, 2
      %v526 = vsel %vm513, %v524, %v525
      %v527 = vrot.slane %v370, 2
      %v528 = vsel %vm513, %v525, %v527
      %v529 = vrot.slane %v371, 2
      %v530 = vrot.slane %v372, 2
      %v531 = vsel %vm513, %v529, %v530
      %v532 = vrot.slane %v373, 2
      %v533 = vsel %vm513, %v530, %v532
      %542 = vrot.lane.b32.xlu0 %v516, 127
      %v543 = vpop.permute.xlu0 %542
      %544 = vrot.lane.b32.xlu0 %v518, 127
      %v545 = vpop.permute.xlu0 %544
      %546 = vrot.lane.b32.xlu0 %v521, 127
      %v547 = vpop.permute.xlu0 %546
      %548 = vrot.lane.b32.xlu0 %v523, 127
      %v549 = vpop.permute.xlu0 %548
      %550 = vrot.lane.b32.xlu0 %v526, 127
      %v551 = vpop.permute.xlu0 %550
      %552 = vrot.lane.b32.xlu0 %v528, 127
      %v553 = vpop.permute.xlu0 %552
      %554 = vrot.lane.b32.xlu0 %v531, 127
      %v555 = vpop.permute.xlu0 %554
      %556 = vrot.lane.b32.xlu0 %v533, 127
      %v557 = vpop.permute.xlu0 %556
      %566 = vrot.lane.b32.xlu0 %v516, 126
      %v567 = vpop.permute.xlu0 %566
      %568 = vrot.lane.b32.xlu0 %v518, 126
      %v569 = vpop.permute.xlu0 %568
      %570 = vrot.lane.b32.xlu0 %v521, 126
      %v571 = vpop.permute.xlu0 %570
      %572 = vrot.lane.b32.xlu0 %v523, 126
      %v573 = vpop.permute.xlu0 %572
      %574 = vrot.lane.b32.xlu0 %v526, 126
      %v575 = vpop.permute.xlu0 %574
      %576 = vrot.lane.b32.xlu0 %v528, 126
      %v577 = vpop.permute.xlu0 %576
      %578 = vrot.lane.b32.xlu0 %v531, 126
      %v579 = vpop.permute.xlu0 %578
      %580 = vrot.lane.b32.xlu0 %v533, 126
      %v581 = vpop.permute.xlu0 %580
      %v590 = vcombine.low %v362, %v368
      %v591 = vcombine.high %v362, %v368
      %v593 = vunpack.c.l.s4 1983009808
      %v594 = vunpack.c.0.s8 %v593
      %v595 = vlaneseq
      %v596 = vshrl.u32 %v595, 7
      %v597 = vsub.s32 %v594, %v596
      %v598 = vrot.slane %v590, %v597
      %v600 = vunpack.c.l.s4 1983009808
      %v601 = vunpack.c.0.s8 %v600
      %v602 = vlaneseq
      %v603 = vshrl.u32 %v602, 7
      %v604 = vsub.s32 %v601, %v603
      %v605 = vrot.slane %v591, %v604
      %v606 = vcombine.low %v365, %v371
      %v607 = vcombine.high %v365, %v371
      %v609 = vunpack.c.l.s4 1983009808
      %v610 = vunpack.c.0.s8 %v609
      %v611 = vlaneseq
      %v612 = vshrl.u32 %v611, 7
      %v613 = vsub.s32 %v610, %v612
      %v614 = vrot.slane %v606, %v613
      %v616 = vunpack.c.l.s4 1983009808
      %v617 = vunpack.c.0.s8 %v616
      %v618 = vlaneseq
      %v619 = vshrl.u32 %v618, 7
      %v620 = vsub.s32 %v617, %v619
      %v621 = vrot.slane %v607, %v620
      %v622 = vcombine.low %v385, %v393
      %v623 = vcombine.high %v385, %v393
      %v625 = vunpack.c.l.s4 1983009808
      %v626 = vunpack.c.0.s8 %v625
      %v627 = vlaneseq
      %v628 = vshrl.u32 %v627, 7
      %v629 = vsub.s32 %v626, %v628
      %v630 = vrot.slane %v622, %v629
      %v632 = vunpack.c.l.s4 1983009808
      %v633 = vunpack.c.0.s8 %v632
      %v634 = vlaneseq
      %v635 = vshrl.u32 %v634, 7
      %v636 = vsub.s32 %v633, %v635
      %v637 = vrot.slane %v623, %v636
      %v638 = vcombine.low %v389, %v397
      %v639 = vcombine.high %v389, %v397
      %v641 = vunpack.c.l.s4 1983009808
      %v642 = vunpack.c.0.s8 %v641
      %v643 = vlaneseq
      %v644 = vshrl.u32 %v643, 7
      %v645 = vsub.s32 %v642, %v644
      %v646 = vrot.slane %v638, %v645
      %v648 = vunpack.c.l.s4 1983009808
      %v649 = vunpack.c.0.s8 %v648
      %v650 = vlaneseq
      %v651 = vshrl.u32 %v650, 7
      %v652 = vsub.s32 %v649, %v651
      %v653 = vrot.slane %v639, %v652
      %v654 = vcombine.low %v598, %v614
      %v655 = vcombine.high %v598, %v614
      %v657 = vunpack.c.l.s4 1934713408
      %v658 = vunpack.c.0.s8 %v657
      %v659 = vlaneseq
      %v660 = vshrl.u32 %v659, 7
      %v661 = vsub.s32 %v658, %v660
      %v662 = vrot.slane %v654, %v661
      %v664 = vunpack.c.l.s4 1934713408
      %v665 = vunpack.c.0.s8 %v664
      %v666 = vlaneseq
      %v667 = vshrl.u32 %v666, 7
      %v668 = vsub.s32 %v665, %v667
      %v669 = vrot.slane %v655, %v668
      %v670 = vcombine.low %v605, %v621
      %v671 = vcombine.high %v605, %v621
      %v673 = vunpack.c.l.s4 1934713408
      %v674 = vunpack.c.0.s8 %v673
      %v675 = vlaneseq
      %v676 = vshrl.u32 %v675, 7
      %v677 = vsub.s32 %v674, %v676
      %v678 = vrot.slane %v670, %v677
      %v680 = vunpack.c.l.s4 1934713408
      %v681 = vunpack.c.0.s8 %v680
      %v682 = vlaneseq
      %v683 = vshrl.u32 %v682, 7
      %v684 = vsub.s32 %v681, %v683
      %v685 = vrot.slane %v671, %v684
      %v686 = vcombine.low %v630, %v646
      %v687 = vcombine.high %v630, %v646
      %v689 = vunpack.c.l.s4 1934713408
      %v690 = vunpack.c.0.s8 %v689
      %v691 = vlaneseq
      %v692 = vshrl.u32 %v691, 7
      %v693 = vsub.s32 %v690, %v692
      %v694 = vrot.slane %v686, %v693
      %v696 = vunpack.c.l.s4 1934713408
      %v697 = vunpack.c.0.s8 %v696
      %v698 = vlaneseq
      %v699 = vshrl.u32 %v698, 7
      %v700 = vsub.s32 %v697, %v699
      %v701 = vrot.slane %v687, %v700
      %v702 = vcombine.low %v637, %v653
      %v703 = vcombine.high %v637, %v653
      %v705 = vunpack.c.l.s4 1934713408
      %v706 = vunpack.c.0.s8 %v705
      %v707 = vlaneseq
      %v708 = vshrl.u32 %v707, 7
      %v709 = vsub.s32 %v706, %v708
      %v710 = vrot.slane %v702, %v709
      %v712 = vunpack.c.l.s4 1934713408
      %v713 = vunpack.c.0.s8 %v712
      %v714 = vlaneseq
      %v715 = vshrl.u32 %v714, 7
      %v716 = vsub.s32 %v713, %v715
      %v717 = vrot.slane %v703, %v716
      %v718 = vcombine.low %v662, %v694
      %v719 = vcombine.high %v662, %v694
      %v720 = vcombine.low %v669, %v701
      %v721 = vcombine.high %v669, %v701
      %v722 = vcombine.low %v678, %v710
      %v723 = vcombine.high %v678, %v710
      %v724 = vcombine.low %v685, %v717
      %v725 = vcombine.high %v685, %v717
      %v726 = vcombine.low %v409, %v417
      %v727 = vcombine.high %v409, %v417
      %v729 = vunpack.c.l.s4 1983009808
      %v730 = vunpack.c.0.s8 %v729
      %v731 = vlaneseq
      %v732 = vshrl.u32 %v731, 7
      %v733 = vsub.s32 %v730, %v732
      %v734 = vrot.slane %v726, %v733
      %v736 = vunpack.c.l.s4 1983009808
      %v737 = vunpack.c.0.s8 %v736
      %v738 = vlaneseq
      %v739 = vshrl.u32 %v738, 7
      %v740 = vsub.s32 %v737, %v739
      %v741 = vrot.slane %v727, %v740
      %v742 = vcombine.low %v413, %v421
      %v743 = vcombine.high %v413, %v421
      %v745 = vunpack.c.l.s4 1983009808
      %v746 = vunpack.c.0.s8 %v745
      %v747 = vlaneseq
      %v748 = vshrl.u32 %v747, 7
      %v749 = vsub.s32 %v746, %v748
      %v750 = vrot.slane %v742, %v749
      %v752 = vunpack.c.l.s4 1983009808
      %v753 = vunpack.c.0.s8 %v752
      %v754 = vlaneseq
      %v755 = vshrl.u32 %v754, 7
      %v756 = vsub.s32 %v753, %v755
      %v757 = vrot.slane %v743, %v756
      %v758 = vcombine.low %v439, %v449
      %v759 = vcombine.high %v439, %v449
      %v761 = vunpack.c.l.s4 1983009808
      %v762 = vunpack.c.0.s8 %v761
      %v763 = vlaneseq
      %v764 = vshrl.u32 %v763, 7
      %v765 = vsub.s32 %v762, %v764
      %v766 = vrot.slane %v758, %v765
      %v768 = vunpack.c.l.s4 1983009808
      %v769 = vunpack.c.0.s8 %v768
      %v770 = vlaneseq
      %v771 = vshrl.u32 %v770, 7
      %v772 = vsub.s32 %v769, %v771
      %v773 = vrot.slane %v759, %v772
      %v774 = vcombine.low %v444, %v454
      %v775 = vcombine.high %v444, %v454
      %v777 = vunpack.c.l.s4 1983009808
      %v778 = vunpack.c.0.s8 %v777
      %v779 = vlaneseq
      %v780 = vshrl.u32 %v779, 7
      %v781 = vsub.s32 %v778, %v780
      %v782 = vrot.slane %v774, %v781
      %v784 = vunpack.c.l.s4 1983009808
      %v785 = vunpack.c.0.s8 %v784
      %v786 = vlaneseq
      %v787 = vshrl.u32 %v786, 7
      %v788 = vsub.s32 %v785, %v787
      %v789 = vrot.slane %v775, %v788
      %v790 = vcombine.low %v734, %v750
      %v791 = vcombine.high %v734, %v750
      %v793 = vunpack.c.l.s4 1934713408
      %v794 = vunpack.c.0.s8 %v793
      %v795 = vlaneseq
      %v796 = vshrl.u32 %v795, 7
      %v797 = vsub.s32 %v794, %v796
      %v798 = vrot.slane %v790, %v797
      %v800 = vunpack.c.l.s4 1934713408
      %v801 = vunpack.c.0.s8 %v800
      %v802 = vlaneseq
      %v803 = vshrl.u32 %v802, 7
      %v804 = vsub.s32 %v801, %v803
      %v805 = vrot.slane %v791, %v804
      %v806 = vcombine.low %v741, %v757
      %v807 = vcombine.high %v741, %v757
      %v809 = vunpack.c.l.s4 1934713408
      %v810 = vunpack.c.0.s8 %v809
      %v811 = vlaneseq
      %v812 = vshrl.u32 %v811, 7
      %v813 = vsub.s32 %v810, %v812
      %v814 = vrot.slane %v806, %v813
      %v816 = vunpack.c.l.s4 1934713408
      %v817 = vunpack.c.0.s8 %v816
      %v818 = vlaneseq
      %v819 = vshrl.u32 %v818, 7
      %v820 = vsub.s32 %v817, %v819
      %v821 = vrot.slane %v807, %v820
      %v822 = vcombine.low %v766, %v782
      %v823 = vcombine.high %v766, %v782
      %v825 = vunpack.c.l.s4 1934713408
      %v826 = vunpack.c.0.s8 %v825
      %v827 = vlaneseq
      %v828 = vshrl.u32 %v827, 7
      %v829 = vsub.s32 %v826, %v828
      %v830 = vrot.slane %v822, %v829
      %v832 = vunpack.c.l.s4 1934713408
      %v833 = vunpack.c.0.s8 %v832
      %v834 = vlaneseq
      %v835 = vshrl.u32 %v834, 7
      %v836 = vsub.s32 %v833, %v835
      %v837 = vrot.slane %v823, %v836
      %v838 = vcombine.low %v773, %v789
      %v839 = vcombine.high %v773, %v789
      %v841 = vunpack.c.l.s4 1934713408
      %v842 = vunpack.c.0.s8 %v841
      %v843 = vlaneseq
      %v844 = vshrl.u32 %v843, 7
      %v845 = vsub.s32 %v842, %v844
      %v846 = vrot.slane %v838, %v845
      %v848 = vunpack.c.l.s4 1934713408
      %v849 = vunpack.c.0.s8 %v848
      %v850 = vlaneseq
      %v851 = vshrl.u32 %v850, 7
      %v852 = vsub.s32 %v849, %v851
      %v853 = vrot.slane %v839, %v852
      %v854 = vcombine.low %v798, %v830
      %v855 = vcombine.high %v798, %v830
      %v856 = vcombine.low %v805, %v837
      %v857 = vcombine.high %v805, %v837
      %v858 = vcombine.low %v814, %v846
      %v859 = vcombine.high %v814, %v846
      %v860 = vcombine.low %v821, %v853
      %v861 = vcombine.high %v821, %v853
      %v862 = vcombine.low %v466, %v474
      %v863 = vcombine.high %v466, %v474
      %v865 = vunpack.c.l.s4 1983009808
      %v866 = vunpack.c.0.s8 %v865
      %v867 = vlaneseq
      %v868 = vshrl.u32 %v867, 7
      %v869 = vsub.s32 %v866, %v868
      %v870 = vrot.slane %v862, %v869
      %v872 = vunpack.c.l.s4 1983009808
      %v873 = vunpack.c.0.s8 %v872
      %v874 = vlaneseq
      %v875 = vshrl.u32 %v874, 7
      %v876 = vsub.s32 %v873, %v875
      %v877 = vrot.slane %v863, %v876
      %v878 = vcombine.low %v470, %v478
      %v879 = vcombine.high %v470, %v478
      %v881 = vunpack.c.l.s4 1983009808
      %v882 = vunpack.c.0.s8 %v881
      %v883 = vlaneseq
      %v884 = vshrl.u32 %v883, 7
      %v885 = vsub.s32 %v882, %v884
      %v886 = vrot.slane %v878, %v885
      %v888 = vunpack.c.l.s4 1983009808
      %v889 = vunpack.c.0.s8 %v888
      %v890 = vlaneseq
      %v891 = vshrl.u32 %v890, 7
      %v892 = vsub.s32 %v889, %v891
      %v893 = vrot.slane %v879, %v892
      %v894 = vcombine.low %v490, %v498
      %v895 = vcombine.high %v490, %v498
      %v897 = vunpack.c.l.s4 1983009808
      %v898 = vunpack.c.0.s8 %v897
      %v899 = vlaneseq
      %v900 = vshrl.u32 %v899, 7
      %v901 = vsub.s32 %v898, %v900
      %v902 = vrot.slane %v894, %v901
      %v904 = vunpack.c.l.s4 1983009808
      %v905 = vunpack.c.0.s8 %v904
      %v906 = vlaneseq
      %v907 = vshrl.u32 %v906, 7
      %v908 = vsub.s32 %v905, %v907
      %v909 = vrot.slane %v895, %v908
      %v910 = vcombine.low %v494, %v502
      %v911 = vcombine.high %v494, %v502
      %v913 = vunpack.c.l.s4 1983009808
      %v914 = vunpack.c.0.s8 %v913
      %v915 = vlaneseq
      %v916 = vshrl.u32 %v915, 7
      %v917 = vsub.s32 %v914, %v916
      %v918 = vrot.slane %v910, %v917
      %v920 = vunpack.c.l.s4 1983009808
      %v921 = vunpack.c.0.s8 %v920
      %v922 = vlaneseq
      %v923 = vshrl.u32 %v922, 7
      %v924 = vsub.s32 %v921, %v923
      %v925 = vrot.slane %v911, %v924
      %v926 = vcombine.low %v870, %v886
      %v927 = vcombine.high %v870, %v886
      %v929 = vunpack.c.l.s4 1934713408
      %v930 = vunpack.c.0.s8 %v929
      %v931 = vlaneseq
      %v932 = vshrl.u32 %v931, 7
      %v933 = vsub.s32 %v930, %v932
      %v934 = vrot.slane %v926, %v933
      %v936 = vunpack.c.l.s4 1934713408
      %v937 = vunpack.c.0.s8 %v936
      %v938 = vlaneseq
      %v939 = vshrl.u32 %v938, 7
      %v940 = vsub.s32 %v937, %v939
      %v941 = vrot.slane %v927, %v940
      %v942 = vcombine.low %v877, %v893
      %v943 = vcombine.high %v877, %v893
      %v945 = vunpack.c.l.s4 1934713408
      %v946 = vunpack.c.0.s8 %v945
      %v947 = vlaneseq
      %v948 = vshrl.u32 %v947, 7
      %v949 = vsub.s32 %v946, %v948
      %v950 = vrot.slane %v942, %v949
      %v952 = vunpack.c.l.s4 1934713408
      %v953 = vunpack.c.0.s8 %v952
      %v954 = vlaneseq
      %v955 = vshrl.u32 %v954, 7
      %v956 = vsub.s32 %v953, %v955
      %v957 = vrot.slane %v943, %v956
      %v958 = vcombine.low %v902, %v918
      %v959 = vcombine.high %v902, %v918
      %v961 = vunpack.c.l.s4 1934713408
      %v962 = vunpack.c.0.s8 %v961
      %v963 = vlaneseq
      %v964 = vshrl.u32 %v963, 7
      %v965 = vsub.s32 %v962, %v964
      %v966 = vrot.slane %v958, %v965
      %v968 = vunpack.c.l.s4 1934713408
      %v969 = vunpack.c.0.s8 %v968
      %v970 = vlaneseq
      %v971 = vshrl.u32 %v970, 7
      %v972 = vsub.s32 %v969, %v971
      %v973 = vrot.slane %v959, %v972
      %v974 = vcombine.low %v909, %v925
      %v975 = vcombine.high %v909, %v925
      %v977 = vunpack.c.l.s4 1934713408
      %v978 = vunpack.c.0.s8 %v977
      %v979 = vlaneseq
      %v980 = vshrl.u32 %v979, 7
      %v981 = vsub.s32 %v978, %v980
      %v982 = vrot.slane %v974, %v981
      %v984 = vunpack.c.l.s4 1934713408
      %v985 = vunpack.c.0.s8 %v984
      %v986 = vlaneseq
      %v987 = vshrl.u32 %v986, 7
      %v988 = vsub.s32 %v985, %v987
      %v989 = vrot.slane %v975, %v988
      %v990 = vcombine.low %v934, %v966
      %v991 = vcombine.high %v934, %v966
      %v992 = vcombine.low %v941, %v973
      %v993 = vcombine.high %v941, %v973
      %v994 = vcombine.low %v950, %v982
      %v995 = vcombine.high %v950, %v982
      %v996 = vcombine.low %v957, %v989
      %v997 = vcombine.high %v957, %v989
      %v998 = vcombine.low %v516, %v526
      %v999 = vcombine.high %v516, %v526
      %v1001 = vunpack.c.l.s4 1983009808
      %v1002 = vunpack.c.0.s8 %v1001
      %v1003 = vlaneseq
      %v1004 = vshrl.u32 %v1003, 7
      %v1005 = vsub.s32 %v1002, %v1004
      %v1006 = vrot.slane %v998, %v1005
      %v1008 = vunpack.c.l.s4 1983009808
      %v1009 = vunpack.c.0.s8 %v1008
      %v1010 = vlaneseq
      %v1011 = vshrl.u32 %v1010, 7
      %v1012 = vsub.s32 %v1009, %v1011
      %v1013 = vrot.slane %v999, %v1012
      %v1014 = vcombine.low %v521, %v531
      %v1015 = vcombine.high %v521, %v531
      %v1017 = vunpack.c.l.s4 1983009808
      %v1018 = vunpack.c.0.s8 %v1017
      %v1019 = vlaneseq
      %v1020 = vshrl.u32 %v1019, 7
      %v1021 = vsub.s32 %v1018, %v1020
      %v1022 = vrot.slane %v1014, %v1021
      %v1024 = vunpack.c.l.s4 1983009808
      %v1025 = vunpack.c.0.s8 %v1024
      %v1026 = vlaneseq
      %v1027 = vshrl.u32 %v1026, 7
      %v1028 = vsub.s32 %v1025, %v1027
      %v1029 = vrot.slane %v1015, %v1028
      %v1030 = vcombine.low %v543, %v551
      %v1031 = vcombine.high %v543, %v551
      %v1033 = vunpack.c.l.s4 1983009808
      %v1034 = vunpack.c.0.s8 %v1033
      %v1035 = vlaneseq
      %v1036 = vshrl.u32 %v1035, 7
      %v1037 = vsub.s32 %v1034, %v1036
      %v1038 = vrot.slane %v1030, %v1037
      %v1040 = vunpack.c.l.s4 1983009808
      %v1041 = vunpack.c.0.s8 %v1040
      %v1042 = vlaneseq
      %v1043 = vshrl.u32 %v1042, 7
      %v1044 = vsub.s32 %v1041, %v1043
      %v1045 = vrot.slane %v1031, %v1044
      %v1046 = vcombine.low %v547, %v555
      %v1047 = vcombine.high %v547, %v555
      %v1049 = vunpack.c.l.s4 1983009808
      %v1050 = vunpack.c.0.s8 %v1049
      %v1051 = vlaneseq
      %v1052 = vshrl.u32 %v1051, 7
      %v1053 = vsub.s32 %v1050, %v1052
      %v1054 = vrot.slane %v1046, %v1053
      %v1056 = vunpack.c.l.s4 1983009808
      %v1057 = vunpack.c.0.s8 %v1056
      %v1058 = vlaneseq
      %v1059 = vshrl.u32 %v1058, 7
      %v1060 = vsub.s32 %v1057, %v1059
      %v1061 = vrot.slane %v1047, %v1060
      %v1062 = vcombine.low %v1006, %v1022
      %v1063 = vcombine.high %v1006, %v1022
      %v1065 = vunpack.c.l.s4 1934713408
      %v1066 = vunpack.c.0.s8 %v1065
      %v1067 = vlaneseq
      %v1068 = vshrl.u32 %v1067, 7
      %v1069 = vsub.s32 %v1066, %v1068
      %v1070 = vrot.slane %v1062, %v1069
      %v1072 = vunpack.c.l.s4 1934713408
      %v1073 = vunpack.c.0.s8 %v1072
      %v1074 = vlaneseq
      %v1075 = vshrl.u32 %v1074, 7
      %v1076 = vsub.s32 %v1073, %v1075
      %v1077 = vrot.slane %v1063, %v1076
      %v1078 = vcombine.low %v1013, %v1029
      %v1079 = vcombine.high %v1013, %v1029
      %v1081 = vunpack.c.l.s4 1934713408
      %v1082 = vunpack.c.0.s8 %v1081
      %v1083 = vlaneseq
      %v1084 = vshrl.u32 %v1083, 7
      %v1085 = vsub.s32 %v1082, %v1084
      %v1086 = vrot.slane %v1078, %v1085
      %v1088 = vunpack.c.l.s4 1934713408
      %v1089 = vunpack.c.0.s8 %v1088
      %v1090 = vlaneseq
      %v1091 = vshrl.u32 %v1090, 7
      %v1092 = vsub.s32 %v1089, %v1091
      %v1093 = vrot.slane %v1079, %v1092
      %v1094 = vcombine.low %v1038, %v1054
      %v1095 = vcombine.high %v1038, %v1054
      %v1097 = vunpack.c.l.s4 1934713408
      %v1098 = vunpack.c.0.s8 %v1097
      %v1099 = vlaneseq
      %v1100 = vshrl.u32 %v1099, 7
      %v1101 = vsub.s32 %v1098, %v1100
      %v1102 = vrot.slane %v1094, %v1101
      %v1104 = vunpack.c.l.s4 1934713408
      %v1105 = vunpack.c.0.s8 %v1104
      %v1106 = vlaneseq
      %v1107 = vshrl.u32 %v1106, 7
      %v1108 = vsub.s32 %v1105, %v1107
      %v1109 = vrot.slane %v1095, %v1108
      %v1110 = vcombine.low %v1045, %v1061
      %v1111 = vcombine.high %v1045, %v1061
      %v1113 = vunpack.c.l.s4 1934713408
      %v1114 = vunpack.c.0.s8 %v1113
      %v1115 = vlaneseq
      %v1116 = vshrl.u32 %v1115, 7
      %v1117 = vsub.s32 %v1114, %v1116
      %v1118 = vrot.slane %v1110, %v1117
      %v1120 = vunpack.c.l.s4 1934713408
      %v1121 = vunpack.c.0.s8 %v1120
      %v1122 = vlaneseq
      %v1123 = vshrl.u32 %v1122, 7
      %v1124 = vsub.s32 %v1121, %v1123
      %v1125 = vrot.slane %v1111, %v1124
      %v1126 = vcombine.low %v1070, %v1102
      %v1127 = vcombine.high %v1070, %v1102
      %v1128 = vcombine.low %v1077, %v1109
      %v1129 = vcombine.high %v1077, %v1109
      %v1130 = vcombine.low %v1086, %v1118
      %v1131 = vcombine.high %v1086, %v1118
      %v1132 = vcombine.low %v1093, %v1125
      %v1133 = vcombine.high %v1093, %v1125
      %v1134 = vcombine.low %v567, %v575
      %v1135 = vcombine.high %v567, %v575
      %v1137 = vunpack.c.l.s4 1983009808
      %v1138 = vunpack.c.0.s8 %v1137
      %v1139 = vlaneseq
      %v1140 = vshrl.u32 %v1139, 7
      %v1141 = vsub.s32 %v1138, %v1140
      %v1142 = vrot.slane %v1134, %v1141
      %v1144 = vunpack.c.l.s4 1983009808
      %v1145 = vunpack.c.0.s8 %v1144
      %v1146 = vlaneseq
      %v1147 = vshrl.u32 %v1146, 7
      %v1148 = vsub.s32 %v1145, %v1147
      %v1149 = vrot.slane %v1135, %v1148
      %v1150 = vcombine.low %v571, %v579
      %v1151 = vcombine.high %v571, %v579
      %v1153 = vunpack.c.l.s4 1983009808
      %v1154 = vunpack.c.0.s8 %v1153
      %v1155 = vlaneseq
      %v1156 = vshrl.u32 %v1155, 7
      %v1157 = vsub.s32 %v1154, %v1156
      %v1158 = vrot.slane %v1150, %v1157
      %v1160 = vunpack.c.l.s4 1983009808
      %v1161 = vunpack.c.0.s8 %v1160
      %v1162 = vlaneseq
      %v1163 = vshrl.u32 %v1162, 7
      %v1164 = vsub.s32 %v1161, %v1163
      %v1165 = vrot.slane %v1151, %v1164
      %v1166 = vcombine.low %v1142, %v1158
      %v1167 = vcombine.high %v1142, %v1158
      %v1169 = vunpack.c.l.s4 1934713408
      %v1170 = vunpack.c.0.s8 %v1169
      %v1171 = vlaneseq
      %v1172 = vshrl.u32 %v1171, 7
      %v1173 = vsub.s32 %v1170, %v1172
      %v1174 = vrot.slane %v1166, %v1173
      %v1176 = vunpack.c.l.s4 1934713408
      %v1177 = vunpack.c.0.s8 %v1176
      %v1178 = vlaneseq
      %v1179 = vshrl.u32 %v1178, 7
      %v1180 = vsub.s32 %v1177, %v1179
      %v1181 = vrot.slane %v1167, %v1180
      %v1182 = vcombine.low %v1149, %v1165
      %v1183 = vcombine.high %v1149, %v1165
      %v1185 = vunpack.c.l.s4 1934713408
      %v1186 = vunpack.c.0.s8 %v1185
      %v1187 = vlaneseq
      %v1188 = vshrl.u32 %v1187, 7
      %v1189 = vsub.s32 %v1186, %v1188
      %v1190 = vrot.slane %v1182, %v1189
      %v1192 = vunpack.c.l.s4 1934713408
      %v1193 = vunpack.c.0.s8 %v1192
      %v1194 = vlaneseq
      %v1195 = vshrl.u32 %v1194, 7
      %v1196 = vsub.s32 %v1193, %v1195
      %v1197 = vrot.slane %v1183, %v1196
      %v1198 = vcombine.high %v1174, 0.0
      %v1199 = vcombine.high %v1181, 0.0
      %v1200 = vcombine.high %v1190, 0.0
      %v1201 = vcombine.high %v1197, 0.0
      %v1202 = vcombine.low %v363, %v369
      %v1203 = vcombine.high %v363, %v369
      %v1205 = vunpack.c.l.s4 1983009808
      %v1206 = vunpack.c.0.s8 %v1205
      %v1207 = vlaneseq
      %v1208 = vshrl.u32 %v1207, 7
      %v1209 = vsub.s32 %v1206, %v1208
      %v1210 = vrot.slane %v1202, %v1209
      %v1212 = vunpack.c.l.s4 1983009808
      %v1213 = vunpack.c.0.s8 %v1212
      %v1214 = vlaneseq
      %v1215 = vshrl.u32 %v1214, 7
      %v1216 = vsub.s32 %v1213, %v1215
      %v1217 = vrot.slane %v1203, %v1216
      %v1218 = vcombine.low %v366, %v372
      %v1219 = vcombine.high %v366, %v372
      %v1221 = vunpack.c.l.s4 1983009808
      %v1222 = vunpack.c.0.s8 %v1221
      %v1223 = vlaneseq
      %v1224 = vshrl.u32 %v1223, 7
      %v1225 = vsub.s32 %v1222, %v1224
      %v1226 = vrot.slane %v1218, %v1225
      %v1228 = vunpack.c.l.s4 1983009808
      %v1229 = vunpack.c.0.s8 %v1228
      %v1230 = vlaneseq
      %v1231 = vshrl.u32 %v1230, 7
      %v1232 = vsub.s32 %v1229, %v1231
      %v1233 = vrot.slane %v1219, %v1232
      %v1234 = vcombine.low %v387, %v395
      %v1235 = vcombine.high %v387, %v395
      %v1237 = vunpack.c.l.s4 1983009808
      %v1238 = vunpack.c.0.s8 %v1237
      %v1239 = vlaneseq
      %v1240 = vshrl.u32 %v1239, 7
      %v1241 = vsub.s32 %v1238, %v1240
      %v1242 = vrot.slane %v1234, %v1241
      %v1244 = vunpack.c.l.s4 1983009808
      %v1245 = vunpack.c.0.s8 %v1244
      %v1246 = vlaneseq
      %v1247 = vshrl.u32 %v1246, 7
      %v1248 = vsub.s32 %v1245, %v1247
      %v1249 = vrot.slane %v1235, %v1248
      %v1250 = vcombine.low %v391, %v399
      %v1251 = vcombine.high %v391, %v399
      %v1253 = vunpack.c.l.s4 1983009808
      %v1254 = vunpack.c.0.s8 %v1253
      %v1255 = vlaneseq
      %v1256 = vshrl.u32 %v1255, 7
      %v1257 = vsub.s32 %v1254, %v1256
      %v1258 = vrot.slane %v1250, %v1257
      %v1260 = vunpack.c.l.s4 1983009808
      %v1261 = vunpack.c.0.s8 %v1260
      %v1262 = vlaneseq
      %v1263 = vshrl.u32 %v1262, 7
      %v1264 = vsub.s32 %v1261, %v1263
      %v1265 = vrot.slane %v1251, %v1264
      %v1266 = vcombine.low %v1210, %v1226
      %v1267 = vcombine.high %v1210, %v1226
      %v1269 = vunpack.c.l.s4 1934713408
      %v1270 = vunpack.c.0.s8 %v1269
      %v1271 = vlaneseq
      %v1272 = vshrl.u32 %v1271, 7
      %v1273 = vsub.s32 %v1270, %v1272
      %v1274 = vrot.slane %v1266, %v1273
      %v1276 = vunpack.c.l.s4 1934713408
      %v1277 = vunpack.c.0.s8 %v1276
      %v1278 = vlaneseq
      %v1279 = vshrl.u32 %v1278, 7
      %v1280 = vsub.s32 %v1277, %v1279
      %v1281 = vrot.slane %v1267, %v1280
      %v1282 = vcombine.low %v1217, %v1233
      %v1283 = vcombine.high %v1217, %v1233
      %v1285 = vunpack.c.l.s4 1934713408
      %v1286 = vunpack.c.0.s8 %v1285
      %v1287 = vlaneseq
      %v1288 = vshrl.u32 %v1287, 7
      %v1289 = vsub.s32 %v1286, %v1288
      %v1290 = vrot.slane %v1282, %v1289
      %v1292 = vunpack.c.l.s4 1934713408
      %v1293 = vunpack.c.0.s8 %v1292
      %v1294 = vlaneseq
      %v1295 = vshrl.u32 %v1294, 7
      %v1296 = vsub.s32 %v1293, %v1295
      %v1297 = vrot.slane %v1283, %v1296
      %v1298 = vcombine.low %v1242, %v1258
      %v1299 = vcombine.high %v1242, %v1258
      %v1301 = vunpack.c.l.s4 1934713408
      %v1302 = vunpack.c.0.s8 %v1301
      %v1303 = vlaneseq
      %v1304 = vshrl.u32 %v1303, 7
      %v1305 = vsub.s32 %v1302, %v1304
      %v1306 = vrot.slane %v1298, %v1305
      %v1308 = vunpack.c.l.s4 1934713408
      %v1309 = vunpack.c.0.s8 %v1308
      %v1310 = vlaneseq
      %v1311 = vshrl.u32 %v1310, 7
      %v1312 = vsub.s32 %v1309, %v1311
      %v1313 = vrot.slane %v1299, %v1312
      %v1314 = vcombine.low %v1249, %v1265
      %v1315 = vcombine.high %v1249, %v1265
      %v1317 = vunpack.c.l.s4 1934713408
      %v1318 = vunpack.c.0.s8 %v1317
      %v1319 = vlaneseq
      %v1320 = vshrl.u32 %v1319, 7
      %v1321 = vsub.s32 %v1318, %v1320
      %v1322 = vrot.slane %v1314, %v1321
      %v1324 = vunpack.c.l.s4 1934713408
      %v1325 = vunpack.c.0.s8 %v1324
      %v1326 = vlaneseq
      %v1327 = vshrl.u32 %v1326, 7
      %v1328 = vsub.s32 %v1325, %v1327
      %v1329 = vrot.slane %v1315, %v1328
      %v1330 = vcombine.low %v1274, %v1306
      %v1331 = vcombine.high %v1274, %v1306
      %v1332 = vcombine.low %v1281, %v1313
      %v1333 = vcombine.high %v1281, %v1313
      %v1334 = vcombine.low %v1290, %v1322
      %v1335 = vcombine.high %v1290, %v1322
      %v1336 = vcombine.low %v1297, %v1329
      %v1337 = vcombine.high %v1297, %v1329
      %v1338 = vcombine.low %v411, %v419
      %v1339 = vcombine.high %v411, %v419
      %v1341 = vunpack.c.l.s4 1983009808
      %v1342 = vunpack.c.0.s8 %v1341
      %v1343 = vlaneseq
      %v1344 = vshrl.u32 %v1343, 7
      %v1345 = vsub.s32 %v1342, %v1344
      %v1346 = vrot.slane %v1338, %v1345
      %v1348 = vunpack.c.l.s4 1983009808
      %v1349 = vunpack.c.0.s8 %v1348
      %v1350 = vlaneseq
      %v1351 = vshrl.u32 %v1350, 7
      %v1352 = vsub.s32 %v1349, %v1351
      %v1353 = vrot.slane %v1339, %v1352
      %v1354 = vcombine.low %v415, %v423
      %v1355 = vcombine.high %v415, %v423
      %v1357 = vunpack.c.l.s4 1983009808
      %v1358 = vunpack.c.0.s8 %v1357
      %v1359 = vlaneseq
      %v1360 = vshrl.u32 %v1359, 7
      %v1361 = vsub.s32 %v1358, %v1360
      %v1362 = vrot.slane %v1354, %v1361
      %v1364 = vunpack.c.l.s4 1983009808
      %v1365 = vunpack.c.0.s8 %v1364
      %v1366 = vlaneseq
      %v1367 = vshrl.u32 %v1366, 7
      %v1368 = vsub.s32 %v1365, %v1367
      %v1369 = vrot.slane %v1355, %v1368
      %v1370 = vcombine.low %v441, %v451
      %v1371 = vcombine.high %v441, %v451
      %v1373 = vunpack.c.l.s4 1983009808
      %v1374 = vunpack.c.0.s8 %v1373
      %v1375 = vlaneseq
      %v1376 = vshrl.u32 %v1375, 7
      %v1377 = vsub.s32 %v1374, %v1376
      %v1378 = vrot.slane %v1370, %v1377
      %v1380 = vunpack.c.l.s4 1983009808
      %v1381 = vunpack.c.0.s8 %v1380
      %v1382 = vlaneseq
      %v1383 = vshrl.u32 %v1382, 7
      %v1384 = vsub.s32 %v1381, %v1383
      %v1385 = vrot.slane %v1371, %v1384
      %v1386 = vcombine.low %v446, %v456
      %v1387 = vcombine.high %v446, %v456
      %v1389 = vunpack.c.l.s4 1983009808
      %v1390 = vunpack.c.0.s8 %v1389
      %v1391 = vlaneseq
      %v1392 = vshrl.u32 %v1391, 7
      %v1393 = vsub.s32 %v1390, %v1392
      %v1394 = vrot.slane %v1386, %v1393
      %v1396 = vunpack.c.l.s4 1983009808
      %v1397 = vunpack.c.0.s8 %v1396
      %v1398 = vlaneseq
      %v1399 = vshrl.u32 %v1398, 7
      %v1400 = vsub.s32 %v1397, %v1399
      %v1401 = vrot.slane %v1387, %v1400
      %v1402 = vcombine.low %v1346, %v1362
      %v1403 = vcombine.high %v1346, %v1362
      %v1405 = vunpack.c.l.s4 1934713408
      %v1406 = vunpack.c.0.s8 %v1405
      %v1407 = vlaneseq
      %v1408 = vshrl.u32 %v1407, 7
      %v1409 = vsub.s32 %v1406, %v1408
      %v1410 = vrot.slane %v1402, %v1409
      %v1412 = vunpack.c.l.s4 1934713408
      %v1413 = vunpack.c.0.s8 %v1412
      %v1414 = vlaneseq
      %v1415 = vshrl.u32 %v1414, 7
      %v1416 = vsub.s32 %v1413, %v1415
      %v1417 = vrot.slane %v1403, %v1416
      %v1418 = vcombine.low %v1353, %v1369
      %v1419 = vcombine.high %v1353, %v1369
      %v1421 = vunpack.c.l.s4 1934713408
      %v1422 = vunpack.c.0.s8 %v1421
      %v1423 = vlaneseq
      %v1424 = vshrl.u32 %v1423, 7
      %v1425 = vsub.s32 %v1422, %v1424
      %v1426 = vrot.slane %v1418, %v1425
      %v1428 = vunpack.c.l.s4 1934713408
      %v1429 = vunpack.c.0.s8 %v1428
      %v1430 = vlaneseq
      %v1431 = vshrl.u32 %v1430, 7
      %v1432 = vsub.s32 %v1429, %v1431
      %v1433 = vrot.slane %v1419, %v1432
      %v1434 = vcombine.low %v1378, %v1394
      %v1435 = vcombine.high %v1378, %v1394
      %v1437 = vunpack.c.l.s4 1934713408
      %v1438 = vunpack.c.0.s8 %v1437
      %v1439 = vlaneseq
      %v1440 = vshrl.u32 %v1439, 7
      %v1441 = vsub.s32 %v1438, %v1440
      %v1442 = vrot.slane %v1434, %v1441
      %v1444 = vunpack.c.l.s4 1934713408
      %v1445 = vunpack.c.0.s8 %v1444
      %v1446 = vlaneseq
      %v1447 = vshrl.u32 %v1446, 7
      %v1448 = vsub.s32 %v1445, %v1447
      %v1449 = vrot.slane %v1435, %v1448
      %v1450 = vcombine.low %v1385, %v1401
      %v1451 = vcombine.high %v1385, %v1401
      %v1453 = vunpack.c.l.s4 1934713408
      %v1454 = vunpack.c.0.s8 %v1453
      %v1455 = vlaneseq
      %v1456 = vshrl.u32 %v1455, 7
      %v1457 = vsub.s32 %v1454, %v1456
      %v1458 = vrot.slane %v1450, %v1457
      %v1460 = vunpack.c.l.s4 1934713408
      %v1461 = vunpack.c.0.s8 %v1460
      %v1462 = vlaneseq
      %v1463 = vshrl.u32 %v1462, 7
      %v1464 = vsub.s32 %v1461, %v1463
      %v1465 = vrot.slane %v1451, %v1464
      %v1466 = vcombine.low %v1410, %v1442
      %v1467 = vcombine.high %v1410, %v1442
      %v1468 = vcombine.low %v1417, %v1449
      %v1469 = vcombine.high %v1417, %v1449
      %v1470 = vcombine.low %v1426, %v1458
      %v1471 = vcombine.high %v1426, %v1458
      %v1472 = vcombine.low %v1433, %v1465
      %v1473 = vcombine.high %v1433, %v1465
      %v1474 = vcombine.low %v468, %v476
      %v1475 = vcombine.high %v468, %v476
      %v1477 = vunpack.c.l.s4 1983009808
      %v1478 = vunpack.c.0.s8 %v1477
      %v1479 = vlaneseq
      %v1480 = vshrl.u32 %v1479, 7
      %v1481 = vsub.s32 %v1478, %v1480
      %v1482 = vrot.slane %v1474, %v1481
      %v1484 = vunpack.c.l.s4 1983009808
      %v1485 = vunpack.c.0.s8 %v1484
      %v1486 = vlaneseq
      %v1487 = vshrl.u32 %v1486, 7
      %v1488 = vsub.s32 %v1485, %v1487
      %v1489 = vrot.slane %v1475, %v1488
      %v1490 = vcombine.low %v472, %v480
      %v1491 = vcombine.high %v472, %v480
      %v1493 = vunpack.c.l.s4 1983009808
      %v1494 = vunpack.c.0.s8 %v1493
      %v1495 = vlaneseq
      %v1496 = vshrl.u32 %v1495, 7
      %v1497 = vsub.s32 %v1494, %v1496
      %v1498 = vrot.slane %v1490, %v1497
      %v1500 = vunpack.c.l.s4 1983009808
      %v1501 = vunpack.c.0.s8 %v1500
      %v1502 = vlaneseq
      %v1503 = vshrl.u32 %v1502, 7
      %v1504 = vsub.s32 %v1501, %v1503
      %v1505 = vrot.slane %v1491, %v1504
      %v1506 = vcombine.low %v492, %v500
      %v1507 = vcombine.high %v492, %v500
      %v1509 = vunpack.c.l.s4 1983009808
      %v1510 = vunpack.c.0.s8 %v1509
      %v1511 = vlaneseq
      %v1512 = vshrl.u32 %v1511, 7
      %v1513 = vsub.s32 %v1510, %v1512
      %v1514 = vrot.slane %v1506, %v1513
      %v1516 = vunpack.c.l.s4 1983009808
      %v1517 = vunpack.c.0.s8 %v1516
      %v1518 = vlaneseq
      %v1519 = vshrl.u32 %v1518, 7
      %v1520 = vsub.s32 %v1517, %v1519
      %v1521 = vrot.slane %v1507, %v1520
      %v1522 = vcombine.low %v496, %v504
      %v1523 = vcombine.high %v496, %v504
      %v1525 = vunpack.c.l.s4 1983009808
      %v1526 = vunpack.c.0.s8 %v1525
      %v1527 = vlaneseq
      %v1528 = vshrl.u32 %v1527, 7
      %v1529 = vsub.s32 %v1526, %v1528
      %v1530 = vrot.slane %v1522, %v1529
      %v1532 = vunpack.c.l.s4 1983009808
      %v1533 = vunpack.c.0.s8 %v1532
      %v1534 = vlaneseq
      %v1535 = vshrl.u32 %v1534, 7
      %v1536 = vsub.s32 %v1533, %v1535
      %v1537 = vrot.slane %v1523, %v1536
      %v1538 = vcombine.low %v1482, %v1498
      %v1539 = vcombine.high %v1482, %v1498
      %v1541 = vunpack.c.l.s4 1934713408
      %v1542 = vunpack.c.0.s8 %v1541
      %v1543 = vlaneseq
      %v1544 = vshrl.u32 %v1543, 7
      %v1545 = vsub.s32 %v1542, %v1544
      %v1546 = vrot.slane %v1538, %v1545
      %v1548 = vunpack.c.l.s4 1934713408
      %v1549 = vunpack.c.0.s8 %v1548
      %v1550 = vlaneseq
      %v1551 = vshrl.u32 %v1550, 7
      %v1552 = vsub.s32 %v1549, %v1551
      %v1553 = vrot.slane %v1539, %v1552
      %v1554 = vcombine.low %v1489, %v1505
      %v1555 = vcombine.high %v1489, %v1505
      %v1557 = vunpack.c.l.s4 1934713408
      %v1558 = vunpack.c.0.s8 %v1557
      %v1559 = vlaneseq
      %v1560 = vshrl.u32 %v1559, 7
      %v1561 = vsub.s32 %v1558, %v1560
      %v1562 = vrot.slane %v1554, %v1561
      %v1564 = vunpack.c.l.s4 1934713408
      %v1565 = vunpack.c.0.s8 %v1564
      %v1566 = vlaneseq
      %v1567 = vshrl.u32 %v1566, 7
      %v1568 = vsub.s32 %v1565, %v1567
      %v1569 = vrot.slane %v1555, %v1568
      %v1570 = vcombine.low %v1514, %v1530
      %v1571 = vcombine.high %v1514, %v1530
      %v1573 = vunpack.c.l.s4 1934713408
      %v1574 = vunpack.c.0.s8 %v1573
      %v1575 = vlaneseq
      %v1576 = vshrl.u32 %v1575, 7
      %v1577 = vsub.s32 %v1574, %v1576
      %v1578 = vrot.slane %v1570, %v1577
      %v1580 = vunpack.c.l.s4 1934713408
      %v1581 = vunpack.c.0.s8 %v1580
      %v1582 = vlaneseq
      %v1583 = vshrl.u32 %v1582, 7
      %v1584 = vsub.s32 %v1581, %v1583
      %v1585 = vrot.slane %v1571, %v1584
      %v1586 = vcombine.low %v1521, %v1537
      %v1587 = vcombine.high %v1521, %v1537
      %v1589 = vunpack.c.l.s4 1934713408
      %v1590 = vunpack.c.0.s8 %v1589
      %v1591 = vlaneseq
      %v1592 = vshrl.u32 %v1591, 7
      %v1593 = vsub.s32 %v1590, %v1592
      %v1594 = vrot.slane %v1586, %v1593
      %v1596 = vunpack.c.l.s4 1934713408
      %v1597 = vunpack.c.0.s8 %v1596
      %v1598 = vlaneseq
      %v1599 = vshrl.u32 %v1598, 7
      %v1600 = vsub.s32 %v1597, %v1599
      %v1601 = vrot.slane %v1587, %v1600
      %v1602 = vcombine.low %v1546, %v1578
      %v1603 = vcombine.high %v1546, %v1578
      %v1604 = vcombine.low %v1553, %v1585
      %v1605 = vcombine.high %v1553, %v1585
      %v1606 = vcombine.low %v1562, %v1594
      %v1607 = vcombine.high %v1562, %v1594
      %v1608 = vcombine.low %v1569, %v1601
      %v1609 = vcombine.high %v1569, %v1601
      %v1610 = vcombine.low %v518, %v528
      %v1611 = vcombine.high %v518, %v528
      %v1613 = vunpack.c.l.s4 1983009808
      %v1614 = vunpack.c.0.s8 %v1613
      %v1615 = vlaneseq
      %v1616 = vshrl.u32 %v1615, 7
      %v1617 = vsub.s32 %v1614, %v1616
      %v1618 = vrot.slane %v1610, %v1617
      %v1620 = vunpack.c.l.s4 1983009808
      %v1621 = vunpack.c.0.s8 %v1620
      %v1622 = vlaneseq
      %v1623 = vshrl.u32 %v1622, 7
      %v1624 = vsub.s32 %v1621, %v1623
      %v1625 = vrot.slane %v1611, %v1624
      %v1626 = vcombine.low %v523, %v533
      %v1627 = vcombine.high %v523, %v533
      %v1629 = vunpack.c.l.s4 1983009808
      %v1630 = vunpack.c.0.s8 %v1629
      %v1631 = vlaneseq
      %v1632 = vshrl.u32 %v1631, 7
      %v1633 = vsub.s32 %v1630, %v1632
      %v1634 = vrot.slane %v1626, %v1633
      %v1636 = vunpack.c.l.s4 1983009808
      %v1637 = vunpack.c.0.s8 %v1636
      %v1638 = vlaneseq
      %v1639 = vshrl.u32 %v1638, 7
      %v1640 = vsub.s32 %v1637, %v1639
      %v1641 = vrot.slane %v1627, %v1640
      %v1642 = vcombine.low %v545, %v553
      %v1643 = vcombine.high %v545, %v553
      %v1645 = vunpack.c.l.s4 1983009808
      %v1646 = vunpack.c.0.s8 %v1645
      %v1647 = vlaneseq
      %v1648 = vshrl.u32 %v1647, 7
      %v1649 = vsub.s32 %v1646, %v1648
      %v1650 = vrot.slane %v1642, %v1649
      %v1652 = vunpack.c.l.s4 1983009808
      %v1653 = vunpack.c.0.s8 %v1652
      %v1654 = vlaneseq
      %v1655 = vshrl.u32 %v1654, 7
      %v1656 = vsub.s32 %v1653, %v1655
      %v1657 = vrot.slane %v1643, %v1656
      %v1658 = vcombine.low %v549, %v557
      %v1659 = vcombine.high %v549, %v557
      %v1661 = vunpack.c.l.s4 1983009808
      %v1662 = vunpack.c.0.s8 %v1661
      %v1663 = vlaneseq
      %v1664 = vshrl.u32 %v1663, 7
      %v1665 = vsub.s32 %v1662, %v1664
      %v1666 = vrot.slane %v1658, %v1665
      %v1668 = vunpack.c.l.s4 1983009808
      %v1669 = vunpack.c.0.s8 %v1668
      %v1670 = vlaneseq
      %v1671 = vshrl.u32 %v1670, 7
      %v1672 = vsub.s32 %v1669, %v1671
      %v1673 = vrot.slane %v1659, %v1672
      %v1674 = vcombine.low %v1618, %v1634
      %v1675 = vcombine.high %v1618, %v1634
      %v1677 = vunpack.c.l.s4 1934713408
      %v1678 = vunpack.c.0.s8 %v1677
      %v1679 = vlaneseq
      %v1680 = vshrl.u32 %v1679, 7
      %v1681 = vsub.s32 %v1678, %v1680
      %v1682 = vrot.slane %v1674, %v1681
      %v1684 = vunpack.c.l.s4 1934713408
      %v1685 = vunpack.c.0.s8 %v1684
      %v1686 = vlaneseq
      %v1687 = vshrl.u32 %v1686, 7
      %v1688 = vsub.s32 %v1685, %v1687
      %v1689 = vrot.slane %v1675, %v1688
      %v1690 = vcombine.low %v1625, %v1641
      %v1691 = vcombine.high %v1625, %v1641
      %v1693 = vunpack.c.l.s4 1934713408
      %v1694 = vunpack.c.0.s8 %v1693
      %v1695 = vlaneseq
      %v1696 = vshrl.u32 %v1695, 7
      %v1697 = vsub.s32 %v1694, %v1696
      %v1698 = vrot.slane %v1690, %v1697
      %v1700 = vunpack.c.l.s4 1934713408
      %v1701 = vunpack.c.0.s8 %v1700
      %v1702 = vlaneseq
      %v1703 = vshrl.u32 %v1702, 7
      %v1704 = vsub.s32 %v1701, %v1703
      %v1705 = vrot.slane %v1691, %v1704
      %v1706 = vcombine.low %v1650, %v1666
      %v1707 = vcombine.high %v1650, %v1666
      %v1709 = vunpack.c.l.s4 1934713408
      %v1710 = vunpack.c.0.s8 %v1709
      %v1711 = vlaneseq
      %v1712 = vshrl.u32 %v1711, 7
      %v1713 = vsub.s32 %v1710, %v1712
      %v1714 = vrot.slane %v1706, %v1713
      %v1716 = vunpack.c.l.s4 1934713408
      %v1717 = vunpack.c.0.s8 %v1716
      %v1718 = vlaneseq
      %v1719 = vshrl.u32 %v1718, 7
      %v1720 = vsub.s32 %v1717, %v1719
      %v1721 = vrot.slane %v1707, %v1720
      %v1722 = vcombine.low %v1657, %v1673
      %v1723 = vcombine.high %v1657, %v1673
      %v1725 = vunpack.c.l.s4 1934713408
      %v1726 = vunpack.c.0.s8 %v1725
      %v1727 = vlaneseq
      %v1728 = vshrl.u32 %v1727, 7
      %v1729 = vsub.s32 %v1726, %v1728
      %v1730 = vrot.slane %v1722, %v1729
      %v1732 = vunpack.c.l.s4 1934713408
      %v1733 = vunpack.c.0.s8 %v1732
      %v1734 = vlaneseq
      %v1735 = vshrl.u32 %v1734, 7
      %v1736 = vsub.s32 %v1733, %v1735
      %v1737 = vrot.slane %v1723, %v1736
      %v1738 = vcombine.low %v1682, %v1714
      %v1739 = vcombine.high %v1682, %v1714
      %v1740 = vcombine.low %v1689, %v1721
      %v1741 = vcombine.high %v1689, %v1721
      %v1742 = vcombine.low %v1698, %v1730
      %v1743 = vcombine.high %v1698, %v1730
      %v1744 = vcombine.low %v1705, %v1737
      %v1745 = vcombine.high %v1705, %v1737
      %v1746 = vcombine.low %v569, %v577
      %v1747 = vcombine.high %v569, %v577
      %v1749 = vunpack.c.l.s4 1983009808
      %v1750 = vunpack.c.0.s8 %v1749
      %v1751 = vlaneseq
      %v1752 = vshrl.u32 %v1751, 7
      %v1753 = vsub.s32 %v1750, %v1752
      %v1754 = vrot.slane %v1746, %v1753
      %v1756 = vunpack.c.l.s4 1983009808
      %v1757 = vunpack.c.0.s8 %v1756
      %v1758 = vlaneseq
      %v1759 = vshrl.u32 %v1758, 7
      %v1760 = vsub.s32 %v1757, %v1759
      %v1761 = vrot.slane %v1747, %v1760
      %v1762 = vcombine.low %v573, %v581
      %v1763 = vcombine.high %v573, %v581
      %v1765 = vunpack.c.l.s4 1983009808
      %v1766 = vunpack.c.0.s8 %v1765
      %v1767 = vlaneseq
      %v1768 = vshrl.u32 %v1767, 7
      %v1769 = vsub.s32 %v1766, %v1768
      %v1770 = vrot.slane %v1762, %v1769
      %v1772 = vunpack.c.l.s4 1983009808
      %v1773 = vunpack.c.0.s8 %v1772
      %v1774 = vlaneseq
      %v1775 = vshrl.u32 %v1774, 7
      %v1776 = vsub.s32 %v1773, %v1775
      %v1777 = vrot.slane %v1763, %v1776
      %v1778 = vcombine.low %v1754, %v1770
      %v1779 = vcombine.high %v1754, %v1770
      %v1781 = vunpack.c.l.s4 1934713408
      %v1782 = vunpack.c.0.s8 %v1781
      %v1783 = vlaneseq
      %v1784 = vshrl.u32 %v1783, 7
      %v1785 = vsub.s32 %v1782, %v1784
      %v1786 = vrot.slane %v1778, %v1785
      %v1788 = vunpack.c.l.s4 1934713408
      %v1789 = vunpack.c.0.s8 %v1788
      %v1790 = vlaneseq
      %v1791 = vshrl.u32 %v1790, 7
      %v1792 = vsub.s32 %v1789, %v1791
      %v1793 = vrot.slane %v1779, %v1792
      %v1794 = vcombine.low %v1761, %v1777
      %v1795 = vcombine.high %v1761, %v1777
      %v1797 = vunpack.c.l.s4 1934713408
      %v1798 = vunpack.c.0.s8 %v1797
      %v1799 = vlaneseq
      %v1800 = vshrl.u32 %v1799, 7
      %v1801 = vsub.s32 %v1798, %v1800
      %v1802 = vrot.slane %v1794, %v1801
      %v1804 = vunpack.c.l.s4 1934713408
      %v1805 = vunpack.c.0.s8 %v1804
      %v1806 = vlaneseq
      %v1807 = vshrl.u32 %v1806, 7
      %v1808 = vsub.s32 %v1805, %v1807
      %v1809 = vrot.slane %v1795, %v1808
      %v1810 = vcombine.high %v1786, 0.0
      %v1811 = vcombine.high %v1793, 0.0
      %v1812 = vcombine.high %v1802, 0.0
      %v1813 = vcombine.high %v1809, 0.0
      %1819 = vrot.lane.b32.xlu0 %v719, 16
      %v1820 = vpop.permute.xlu0 %1819
      %1821 = vrot.lane.b32.xlu0 %v855, 16
      %v1822 = vpop.permute.xlu0 %1821
      %1823 = vrot.lane.b32.xlu0 %v991, 16
      %v1824 = vpop.permute.xlu0 %1823
      %1825 = vrot.lane.b32.xlu0 %v1127, 16
      %v1826 = vpop.permute.xlu0 %1825
      %1827 = vrot.lane.b32.xlu0 %v1198, 16
      %v1828 = vpop.permute.xlu0 %1827
      %1839 = vrot.lane.b32.xlu0 %v720, 32
      %v1840 = vpop.permute.xlu0 %1839
      %1841 = vrot.lane.b32.xlu0 %v856, 32
      %v1842 = vpop.permute.xlu0 %1841
      %1843 = vrot.lane.b32.xlu0 %v992, 32
      %v1844 = vpop.permute.xlu0 %1843
      %1845 = vrot.lane.b32.xlu0 %v1128, 32
      %v1846 = vpop.permute.xlu0 %1845
      %1847 = vrot.lane.b32.xlu0 %v1181, 32
      %v1848 = vpop.permute.xlu0 %1847
      %1859 = vrot.lane.b32.xlu0 %v721, 48
      %v1860 = vpop.permute.xlu0 %1859
      %1861 = vrot.lane.b32.xlu0 %v857, 48
      %v1862 = vpop.permute.xlu0 %1861
      %1863 = vrot.lane.b32.xlu0 %v993, 48
      %v1864 = vpop.permute.xlu0 %1863
      %1865 = vrot.lane.b32.xlu0 %v1129, 48
      %v1866 = vpop.permute.xlu0 %1865
      %1867 = vrot.lane.b32.xlu0 %v1199, 48
      %v1868 = vpop.permute.xlu0 %1867
      %1879 = vrot.lane.b32.xlu0 %v722, 64
      %v1880 = vpop.permute.xlu0 %1879
      %1881 = vrot.lane.b32.xlu0 %v858, 64
      %v1882 = vpop.permute.xlu0 %1881
      %1883 = vrot.lane.b32.xlu0 %v994, 64
      %v1884 = vpop.permute.xlu0 %1883
      %1885 = vrot.lane.b32.xlu0 %v1130, 64
      %v1886 = vpop.permute.xlu0 %1885
      %1887 = vrot.lane.b32.xlu0 %v1190, 64
      %v1888 = vpop.permute.xlu0 %1887
      %1899 = vrot.lane.b32.xlu0 %v723, 80
      %v1900 = vpop.permute.xlu0 %1899
      %1901 = vrot.lane.b32.xlu0 %v859, 80
      %v1902 = vpop.permute.xlu0 %1901
      %1903 = vrot.lane.b32.xlu0 %v995, 80
      %v1904 = vpop.permute.xlu0 %1903
      %1905 = vrot.lane.b32.xlu0 %v1131, 80
      %v1906 = vpop.permute.xlu0 %1905
      %1907 = vrot.lane.b32.xlu0 %v1200, 80
      %v1908 = vpop.permute.xlu0 %1907
      %1919 = vrot.lane.b32.xlu0 %v724, 96
      %v1920 = vpop.permute.xlu0 %1919
      %1921 = vrot.lane.b32.xlu0 %v860, 96
      %v1922 = vpop.permute.xlu0 %1921
      %1923 = vrot.lane.b32.xlu0 %v996, 96
      %v1924 = vpop.permute.xlu0 %1923
      %1925 = vrot.lane.b32.xlu0 %v1132, 96
      %v1926 = vpop.permute.xlu0 %1925
      %1927 = vrot.lane.b32.xlu0 %v1197, 96
      %v1928 = vpop.permute.xlu0 %1927
      %1939 = vrot.lane.b32.xlu0 %v725, 112
      %v1940 = vpop.permute.xlu0 %1939
      %1941 = vrot.lane.b32.xlu0 %v861, 112
      %v1942 = vpop.permute.xlu0 %1941
      %1943 = vrot.lane.b32.xlu0 %v997, 112
      %v1944 = vpop.permute.xlu0 %1943
      %1945 = vrot.lane.b32.xlu0 %v1133, 112
      %v1946 = vpop.permute.xlu0 %1945
      %1947 = vrot.lane.b32.xlu0 %v1201, 112
      %v1948 = vpop.permute.xlu0 %1947
      %1959 = vrot.lane.b32.xlu0 %v1331, 16
      %v1960 = vpop.permute.xlu0 %1959
      %1961 = vrot.lane.b32.xlu0 %v1467, 16
      %v1962 = vpop.permute.xlu0 %1961
      %1963 = vrot.lane.b32.xlu0 %v1603, 16
      %v1964 = vpop.permute.xlu0 %1963
      %1965 = vrot.lane.b32.xlu0 %v1739, 16
      %v1966 = vpop.permute.xlu0 %1965
      %1967 = vrot.lane.b32.xlu0 %v1810, 16
      %v1968 = vpop.permute.xlu0 %1967
      %1979 = vrot.lane.b32.xlu0 %v1332, 32
      %v1980 = vpop.permute.xlu0 %1979
      %1981 = vrot.lane.b32.xlu0 %v1468, 32
      %v1982 = vpop.permute.xlu0 %1981
      %1983 = vrot.lane.b32.xlu0 %v1604, 32
      %v1984 = vpop.permute.xlu0 %1983
      %1985 = vrot.lane.b32.xlu0 %v1740, 32
      %v1986 = vpop.permute.xlu0 %1985
      %1987 = vrot.lane.b32.xlu0 %v1793, 32
      %v1988 = vpop.permute.xlu0 %1987
      %1999 = vrot.lane.b32.xlu0 %v1333, 48
      %v2000 = vpop.permute.xlu0 %1999
      %2001 = vrot.lane.b32.xlu0 %v1469, 48
      %v2002 = vpop.permute.xlu0 %2001
      %2003 = vrot.lane.b32.xlu0 %v1605, 48
      %v2004 = vpop.permute.xlu0 %2003
      %2005 = vrot.lane.b32.xlu0 %v1741, 48
      %v2006 = vpop.permute.xlu0 %2005
      %2007 = vrot.lane.b32.xlu0 %v1811, 48
      %v2008 = vpop.permute.xlu0 %2007
      %2019 = vrot.lane.b32.xlu0 %v1334, 64
      %v2020 = vpop.permute.xlu0 %2019
      %2021 = vrot.lane.b32.xlu0 %v1470, 64
      %v2022 = vpop.permute.xlu0 %2021
      %2023 = vrot.lane.b32.xlu0 %v1606, 64
      %v2024 = vpop.permute.xlu0 %2023
      %2025 = vrot.lane.b32.xlu0 %v1742, 64
      %v2026 = vpop.permute.xlu0 %2025
      %2027 = vrot.lane.b32.xlu0 %v1802, 64
      %v2028 = vpop.permute.xlu0 %2027
      %2039 = vrot.lane.b32.xlu0 %v1335, 80
      %v2040 = vpop.permute.xlu0 %2039
      %2041 = vrot.lane.b32.xlu0 %v1471, 80
      %v2042 = vpop.permute.xlu0 %2041
      %2043 = vrot.lane.b32.xlu0 %v1607, 80
      %v2044 = vpop.permute.xlu0 %2043
      %2045 = vrot.lane.b32.xlu0 %v1743, 80
      %v2046 = vpop.permute.xlu0 %2045
      %2047 = vrot.lane.b32.xlu0 %v1812, 80
      %v2048 = vpop.permute.xlu0 %2047
      %2059 = vrot.lane.b32.xlu0 %v1336, 96
      %v2060 = vpop.permute.xlu0 %2059
      %2061 = vrot.lane.b32.xlu0 %v1472, 96
      %v2062 = vpop.permute.xlu0 %2061
      %2063 = vrot.lane.b32.xlu0 %v1608, 96
      %v2064 = vpop.permute.xlu0 %2063
      %2065 = vrot.lane.b32.xlu0 %v1744, 96
      %v2066 = vpop.permute.xlu0 %2065
      %2067 = vrot.lane.b32.xlu0 %v1809, 96
      %v2068 = vpop.permute.xlu0 %2067
      %2079 = vrot.lane.b32.xlu0 %v1337, 112
      %v2080 = vpop.permute.xlu0 %2079
      %2081 = vrot.lane.b32.xlu0 %v1473, 112
      %v2082 = vpop.permute.xlu0 %2081
      %2083 = vrot.lane.b32.xlu0 %v1609, 112
      %v2084 = vpop.permute.xlu0 %2083
      %2085 = vrot.lane.b32.xlu0 %v1745, 112
      %v2086 = vpop.permute.xlu0 %2085
      %2087 = vrot.lane.b32.xlu0 %v1813, 112
      %v2088 = vpop.permute.xlu0 %2087
      %vm2094 = vcmask 130048
      %v2095 = vsel %vm2094, %v718, %v1820
      %v2096 = vsel %vm2094, %v854, %v1822
      %v2097 = vsel %vm2094, %v990, %v1824
      %v2098 = vsel %vm2094, %v1126, %v1826
      %v2099 = vsel %vm2094, %v1174, %v1828
      %vm2100 = vcmask 261120
      %v2101 = vsel %vm2100, %v2095, %v1840
      %v2102 = vsel %vm2100, %v2096, %v1842
      %v2103 = vsel %vm2100, %v2097, %v1844
      %v2104 = vsel %vm2100, %v2098, %v1846
      %v2105 = vsel %vm2100, %v2099, %v1848
      %vm2106 = vcmask 392192
      %v2107 = vsel %vm2106, %v2101, %v1860
      %v2108 = vsel %vm2106, %v2102, %v1862
      %v2109 = vsel %vm2106, %v2103, %v1864
      %v2110 = vsel %vm2106, %v2104, %v1866
      %v2111 = vsel %vm2106, %v2105, %v1868
      %vm2112 = vcmask 523264
      %v2113 = vsel %vm2112, %v2107, %v1880
      %v2114 = vsel %vm2112, %v2108, %v1882
      %v2115 = vsel %vm2112, %v2109, %v1884
      %v2116 = vsel %vm2112, %v2110, %v1886
      %v2117 = vsel %vm2112, %v2111, %v1888
      %vm2118 = vcmask 654336
      %v2119 = vsel %vm2118, %v2113, %v1900
      %v2120 = vsel %vm2118, %v2114, %v1902
      %v2121 = vsel %vm2118, %v2115, %v1904
      %v2122 = vsel %vm2118, %v2116, %v1906
      %v2123 = vsel %vm2118, %v2117, %v1908
      %vm2124 = vcmask 785408
      %v2125 = vsel %vm2124, %v2119, %v1920
      %v2126 = vsel %vm2124, %v2120, %v1922
      %v2127 = vsel %vm2124, %v2121, %v1924
      %v2128 = vsel %vm2124, %v2122, %v1926
      %v2129 = vsel %vm2124, %v2123, %v1928
      %vm2130 = vcmask 916480
      %v2131 = vsel %vm2130, %v2125, %v1940
      %v2132 = vsel %vm2130, %v2126, %v1942
      %v2133 = vsel %vm2130, %v2127, %v1944
      %v2134 = vsel %vm2130, %v2128, %v1946
      %v2135 = vsel %vm2130, %v2129, %v1948
      %v2136 = vsel %vm2094, %v1330, %v1960
      %v2137 = vsel %vm2094, %v1466, %v1962
      %v2138 = vsel %vm2094, %v1602, %v1964
      %v2139 = vsel %vm2094, %v1738, %v1966
      %v2140 = vsel %vm2094, %v1786, %v1968
      %v2141 = vsel %vm2100, %v2136, %v1980
      %v2142 = vsel %vm2100, %v2137, %v1982
      %v2143 = vsel %vm2100, %v2138, %v1984
      %v2144 = vsel %vm2100, %v2139, %v1986
      %v2145 = vsel %vm2100, %v2140, %v1988
      %v2146 = vsel %vm2106, %v2141, %v2000
      %v2147 = vsel %vm2106, %v2142, %v2002
      %v2148 = vsel %vm2106, %v2143, %v2004
      %v2149 = vsel %vm2106, %v2144, %v2006
      %v2150 = vsel %vm2106, %v2145, %v2008
      %v2151 = vsel %vm2112, %v2146, %v2020
      %v2152 = vsel %vm2112, %v2147, %v2022
      %v2153 = vsel %vm2112, %v2148, %v2024
      %v2154 = vsel %vm2112, %v2149, %v2026
      %v2155 = vsel %vm2112, %v2150, %v2028
      %v2156 = vsel %vm2118, %v2151, %v2040
      %v2157 = vsel %vm2118, %v2152, %v2042
      %v2158 = vsel %vm2118, %v2153, %v2044
      %v2159 = vsel %vm2118, %v2154, %v2046
      %v2160 = vsel %vm2118, %v2155, %v2048
      %v2161 = vsel %vm2124, %v2156, %v2060
      %v2162 = vsel %vm2124, %v2157, %v2062
      %v2163 = vsel %vm2124, %v2158, %v2064
      %v2164 = vsel %vm2124, %v2159, %v2066
      %v2165 = vsel %vm2124, %v2160, %v2068
      %v2166 = vsel %vm2130, %v2161, %v2080
      %v2167 = vsel %vm2130, %v2162, %v2082
      %v2168 = vsel %vm2130, %v2163, %v2084
      %v2169 = vsel %vm2130, %v2164, %v2086
      %v2170 = vsel %vm2130, %v2165, %v2088
      %2172 = vset.pattern.permute.xlu0 0
      %2173 = vperm.xlu0 %2172, %v375
      %v2174 = vpop.permute.xlu0 %2173
      %vm2176 = vcmask 293888
      %v2178 = vsel %vm2176, %v374, 0
      %vm2180 = vcmask 1043456
      %v2182 = vsel %vm2180, %v2135, 0
      %v2185 = vsel %vm2180, %v2170, 0
      %2187 = vmatprep.subr.mxu0 %v2166
      %2188 = vmatpush1.msra.mxu0 %v2131
      %2189 = vmatprep.subr.mxu0 %v2167
      %2190 = vmatpush1.msra.mxu0 %v2132
      %2191 = vmatprep.subr.mxu0 %v2168
      %2192 = vmatpush1.msra.mxu0 %v2133
      %2193 = vmatprep.subr.mxu0 %v2169
      %2194 = vmatpush1.msra.mxu0 %v2134
      %2195 = vmatprep.subr.mxu0 %v2185
      %2196 = vmatpush1.msra.mxu0 %v2182
      %2197 = vmatprep.subr.mxu0 0.0
      %2198 = vmatpush1.msra.mxu0 0.0
      %2199 = vmatprep.subr.mxu0 0.0
      %2200 = vmatpush1.msra.mxu0 0.0
      %2201 = vmatprep.subr.mxu0 0.0
      %2202 = vmatpush1.msra.mxu0 0.0
      %2203 = vmatprep.subr.mxu0 0.0
      %2204 = vmatpush1.msra.mxu0 0.0
      %2205 = vmatprep.subr.mxu0 0.0
      %2206 = vmatpush1.msra.mxu0 0.0
      %2207 = vmatprep.subr.mxu0 0.0
      %2208 = vmatpush1.msra.mxu0 0.0
      %2209 = vmatprep.subr.mxu0 0.0
      %2210 = vmatpush1.msra.mxu0 0.0
      %2211 = vmatprep.subr.mxu0 0.0
      %2212 = vmatpush1.msra.mxu0 0.0
      %2213 = vmatprep.subr.mxu0 0.0
      %2214 = vmatpush1.msra.mxu0 0.0
      %2215 = vmatprep.subr.mxu0 0.0
      %2216 = vmatpush1.msra.mxu0 0.0
      %2217 = vmatprep.subr.mxu0 0.0
      %2218 = vmatpush1.msra.mxu0 0.0
      %2219 = vmatprep.subr.mxu0 0.0
      %2220 = vmatpush1.msra.mxu0 0.0
      %2221 = vmatprep.subr.mxu0 0.0
      %2222 = vmatpush1.msra.mxu0 0.0
      %2223 = vmatprep.subr.mxu0 0.0
      %2224 = vmatpush1.msra.mxu0 0.0
      %2225 = vmatprep.subr.mxu0 0.0
      %2226 = vmatpush1.msra.mxu0 0.0
      %2227 = vmatprep.subr.mxu0 0.0
      %2228 = vmatpush1.msra.mxu0 0.0
      %2229 = vmatprep.subr.mxu0 0.0
      %2230 = vmatpush1.msra.mxu0 0.0
      %2231 = vmatprep.subr.mxu0 0.0
      %2232 = vmatpush1.msra.mxu0 0.0
      %2233 = vmatprep.subr.mxu0 0.0
      %2234 = vmatpush1.msra.mxu0 0.0
      %2235 = vmatprep.subr.mxu0 0.0
      %2236 = vmatpush1.msra.mxu0 0.0
      %2237 = vmatprep.subr.mxu0 0.0
      %2238 = vmatpush1.msra.mxu0 0.0
      %2239 = vmatprep.subr.mxu0 0.0
      %2240 = vmatpush1.msra.mxu0 0.0
      %2241 = vmatprep.subr.mxu0 0.0
      %2242 = vmatpush1.msra.mxu0 0.0
      %2243 = vmatprep.subr.mxu0 0.0
      %2244 = vmatpush1.msra.mxu0 0.0
      %2245 = vmatprep.subr.mxu0 0.0
      %2246 = vmatpush1.msra.mxu0 0.0
      %2247 = vmatprep.subr.mxu0 0.0
      %2248 = vmatpush1.msra.mxu0 0.0
      %2249 = vmatprep.subr.mxu0 0.0
      %2250 = vmatpush1.msra.mxu0 0.0
      %2251 = vmatprep.mubr.f32.mxu0 0.0
      %2252 = vmatmul.mubr.f32.gmra.mrb[0].mxu0 %v2178
      %v2253 = vpop.f32.mrb[0].mxu0
      %v2254 = vadd.f32 %v2174, %v2253
      %v2255 = vpop.f32.mrb[0].mxu0
      %v2256 = vadd.f32 %v2174, %v2255
      %2257 = vdwg.mxu0
      %2258 = vst [vmem:[%s170] sm:$0xff] %v2254
      %2259 = vst [vmem:[%s170 + $0x8] sm:$0xff] %v2256
      %p2260 = scmp.lt.s32.totalorder %s14, 1
      %s2261 = scalar_select %p2260, %s14, 1
      %s2262 = smul.addr %s2261, 2
      %s2263 = smul.addr %s2262, 8
      %s2264 = scalar_lea.vmem %s3, %s2263
      // Predicated region
      $region33: #{conv3x3_forward.1} parent=31 // pred_check
        %p2265 = pneg %p100
      $region34: #{conv3x3_forward.1} parent=31 // pred_check_branch
        %2267 = sbr.rel (%p2265) target = $region36
      $region35: #{conv3x3_forward.1} parent=31 // pred_region
        _
      $region36: #{conv3x3_forward.1} parent=31 // pred_fallthru
        _
    $region32: #{conv3x3_forward.1} parent=5 // pred_fallthru
      _
    %p2268 = scmp.le.s32.totalorder 2, %s9
    // Predicated region
    $region37: #{conv3x3_forward.1} parent=5 // pred_check
      %p2269 = pneg %p2268
    $region38: #{conv3x3_forward.1} parent=5 // pred_check_branch
      %2271 = sbr.rel (%p2269) target = $region40
    $region39: #{conv3x3_forward.1} parent=5 // pred_region
      %s2272 = ssub.s32 %s9, 2
      // Predicated region
      $region41: #{conv3x3_forward.1} parent=39 // pred_check
        %p2273 = pneg %p106
      $region42: #{conv3x3_forward.1} parent=39 // pred_check_branch
        %2275 = sbr.rel (%p2273) target = $region44
      $region43: #{conv3x3_forward.1} parent=39 // pred_region
        %p2276 = scmp.lt.s32.totalorder %s15, 1
        %s2277 = scalar_select %p2276, %s15, 1
        %s2278 = smul.addr %s2277, 2
        %s2279 = smul.addr %s2278, 8
        %s2280 = scalar_lea.vmem %s3, %s2279
      $region44: #{conv3x3_forward.1} parent=39 // pred_fallthru
        _
    $region40: #{conv3x3_forward.1} parent=5 // pred_fallthru
      _
  $region6: #{conv3x3_forward.1} parent=0 // loop_footer
    %s13 = sadd.s32 1, %s9
  $region7: #{conv3x3_forward.1} parent=0 // loop_footer_branch
    %8 = sbr.rel target = $region3
  $region8: #{conv3x3_forward.1} parent=0 // loop_exit
    _

</llo_original>
